<compile_context>
chip_gen: v7x
topology: tpu7x:2x2x1
jax: 0.10.0
libtpu: 0.0.40
codegen_flags: <defaults>
</compile_context>

<pallas_src>
import functools

import jax
import jax.numpy as jnp
from jax.experimental import pallas as pl
from jax.experimental.pallas import tpu as pltpu


N_INPUT = 11
N_HIDDEN = 256
N_MID = 128
N_CLASS = 2

DEFAULT_TILE_B = 1024   # rows per grid step (cap)
_ROW_ALIGN = 16         # bf16 sublane packing (also valid for f32)

_COMPILER_PARAMS = pltpu.CompilerParams(
    dimension_semantics=("parallel",),        # megacore split on v7x
    vmem_limit_bytes=48 * 1024 * 1024,        # headroom for tile_b up to ~2048
)


# --------------------------------------------------------------------------
# Kernels
# --------------------------------------------------------------------------
def _two_layer(x, w1, b1, w2, b2):
    """layer_input -> ReLU, layer_input2 -> (dropout=identity) -> ReLU."""
    h1 = jnp.maximum(jnp.dot(x, w1, preferred_element_type=jnp.float32) + b1, 0.0)
    h2 = jnp.maximum(jnp.dot(h1, w2, preferred_element_type=jnp.float32) + b2, 0.0)
    return h1, h2


def _softmax_head(h2, w3, b3):
    logits = jnp.dot(h2, w3, preferred_element_type=jnp.float32) + b3
    m = jnp.max(logits, axis=-1, keepdims=True)
    e = jnp.exp(logits - m)
    return e / jnp.sum(e, axis=-1, keepdims=True)


def dann1_fused_kernel(src_ref, tar_ref,
                       w1_ref, b1_ref, w2_ref, b2_ref, w3_ref, b3_ref,
                       y_ref, s1_ref, t1_ref, s2_ref, t2_ref):
    """Both branches (B == Bt): two matmuls per layer, no concat/slice copies."""
    w1, b1 = w1_ref[...], b1_ref[...]
    w2, b2 = w2_ref[...], b2_ref[...]

    # Source branch (+ classifier head).
    h1s, h2s = _two_layer(src_ref[...], w1, b1, w2, b2)
    s1_ref[...] = h1s.astype(s1_ref.dtype)
    s2_ref[...] = h2s.astype(s2_ref.dtype)
    y_ref[...] = _softmax_head(h2s, w3_ref[...], b3_ref[...]).astype(y_ref.dtype)

    # Target branch.
    h1t, h2t = _two_layer(tar_ref[...], w1, b1, w2, b2)
    t1_ref[...] = h1t.astype(t1_ref.dtype)
    t2_ref[...] = h2t.astype(t2_ref.dtype)


def dann1_src_kernel(src_ref, w1_ref, b1_ref, w2_ref, b2_ref, w3_ref, b3_ref,
                     y_ref, s1_ref, s2_ref):
    h1, h2 = _two_layer(src_ref[...], w1_ref[...], b1_ref[...],
                        w2_ref[...], b2_ref[...])
    s1_ref[...] = h1.astype(s1_ref.dtype)
    s2_ref[...] = h2.astype(s2_ref.dtype)
    y_ref[...] = _softmax_head(h2, w3_ref[...], b3_ref[...]).astype(y_ref.dtype)


def dann1_tar_kernel(tar_ref, w1_ref, b1_ref, w2_ref, b2_ref, t1_ref, t2_ref):
    h1, h2 = _two_layer(tar_ref[...], w1_ref[...], b1_ref[...],
                        w2_ref[...], b2_ref[...])
    t1_ref[...] = h1.astype(t1_ref.dtype)
    t2_ref[...] = h2.astype(t2_ref.dtype)


# --------------------------------------------------------------------------
# Wrapper
# --------------------------------------------------------------------------
def _round_up(x, m):
    return ((x + m - 1) // m) * m


def _pick_tile(batch, tile_b):
    """Largest aligned tile <= tile_b that still gives >=2 grid steps when the
    batch allows (so v7x's two TensorCores both get work)."""
    half = _round_up(max((batch + 1) // 2, 1), _ROW_ALIGN)
    return max(_ROW_ALIGN, min(int(tile_b), half))


def _row_spec(tb, width):
    return pl.BlockSpec((tb, width), lambda i: (i, 0))


def _const_spec(shape):
    # Constant index_map -> DMA'd once, VMEM-resident across the batch grid.
    return pl.BlockSpec(shape, lambda i: (0, 0))


def _weight_specs():
    return [_const_spec((N_INPUT, N_HIDDEN)), _const_spec((1, N_HIDDEN)),
            _const_spec((N_HIDDEN, N_MID)), _const_spec((1, N_MID))]


def _head_specs():
    return [_const_spec((N_MID, N_CLASS)), _const_spec((1, N_CLASS))]


@functools.partial(jax.jit, static_argnames=("tile_b", "mmd_dtype"))
def dann1_forward(src, tar, params, *, tile_b=DEFAULT_TILE_B,
                  mmd_dtype=jnp.bfloat16):
    """src: (B, N_INPUT) f32, tar: (Bt, N_INPUT) f32.

    Returns (y_src, x_src_mmd1, x_tar_mmd1, x_src_mmd2, x_tar_mmd2) matching
    the PyTorch forward (eval-mode dropout).  The four mmd feature outputs are
    stored in `mmd_dtype` (default bfloat16 — halves the dominant HBM
    writeback); pass mmd_dtype=jnp.float32 for float32 outputs.
    """
    w1, b1, w2, b2, w3, b3 = params
    B, Bt = src.shape[0], tar.shape[0]

    if B == Bt:
        # Common DaNN case: one fused call, weights resident across the grid.
        tb = _pick_tile(B, tile_b)
        y, s1, t1, s2, t2 = pl.pallas_call(
            dann1_fused_kernel,
            out_shape=(
                jax.ShapeDtypeStruct((B, N_CLASS), jnp.float32),
                jax.ShapeDtypeStruct((B, N_HIDDEN), mmd_dtype),
                jax.ShapeDtypeStruct((Bt, N_HIDDEN), mmd_dtype),
                jax.ShapeDtypeStruct((B, N_MID), mmd_dtype),
                jax.ShapeDtypeStruct((Bt, N_MID), mmd_dtype),
            ),
            grid=(pl.cdiv(B, tb),),
            in_specs=[_row_spec(tb, N_INPUT), _row_spec(tb, N_INPUT)]
                     + _weight_specs() + _head_specs(),
            out_specs=(
                _row_spec(tb, N_CLASS),
                _row_spec(tb, N_HIDDEN), _row_spec(tb, N_HIDDEN),
                _row_spec(tb, N_MID), _row_spec(tb, N_MID),
            ),
            compiler_params=_COMPILER_PARAMS,
        )(src, tar, w1, b1, w2, b2, w3, b3)
        return y, s1, t1, s2, t2

    # Unequal batches: two calls, each with its own batch grid, so the shorter
    # branch never computes or writes padded rows and no slice copies appear.
    tbs = _pick_tile(B, tile_b)
    y, s1, s2 = pl.pallas_call(
        dann1_src_kernel,
        out_shape=(
            jax.ShapeDtypeStruct((B, N_CLASS), jnp.float32),
            jax.ShapeDtypeStruct((B, N_HIDDEN), mmd_dtype),
            jax.ShapeDtypeStruct((B, N_MID), mmd_dtype),
        ),
        grid=(pl.cdiv(B, tbs),),
        in_specs=[_row_spec(tbs, N_INPUT)] + _weight_specs() + _head_specs(),
        out_specs=(
            _row_spec(tbs, N_CLASS),
            _row_spec(tbs, N_HIDDEN),
            _row_spec(tbs, N_MID),
        ),
        compiler_params=_COMPILER_PARAMS,
    )(src, w1, b1, w2, b2, w3, b3)

    tbt = _pick_tile(Bt, tile_b)
    t1, t2 = pl.pallas_call(
        dann1_tar_kernel,
        out_shape=(
            jax.ShapeDtypeStruct((Bt, N_HIDDEN), mmd_dtype),
            jax.ShapeDtypeStruct((Bt, N_MID), mmd_dtype),
        ),
        grid=(pl.cdiv(Bt, tbt),),
        in_specs=[_row_spec(tbt, N_INPUT)] + _weight_specs(),
        out_specs=(
            _row_spec(tbt, N_HIDDEN),
            _row_spec(tbt, N_MID),
        ),
        compiler_params=_COMPILER_PARAMS,
    )(tar, w1, b1, w2, b2)

    return y, s1, t1, s2, t2


# --------------------------------------------------------------------------
# Init + reference
# --------------------------------------------------------------------------
def init_params(key):
    """Deterministic init mimicking PyTorch nn.Linear (uniform +/- 1/sqrt(fan_in))."""
    def linear(k, fan_in, fan_out):
        kw, kb = jax.random.split(k)
        bound = 1.0 / jnp.sqrt(float(fan_in))
        w = jax.random.uniform(kw, (fan_in, fan_out), jnp.float32, -bound, bound)
        b = jax.random.uniform(kb, (1, fan_out), jnp.float32, -bound, bound)
        return w, b

    k1, k2, k3 = jax.random.split(key, 3)
    w1, b1 = linear(k1, N_INPUT, N_HIDDEN)
    w2, b2 = linear(k2, N_HIDDEN, N_MID)
    w3, b3 = linear(k3, N_MID, N_CLASS)
    return w1, b1, w2, b2, w3, b3


def reference_forward(src, tar, params):
    """Pure-JAX reference (eval-mode dropout)."""
    w1, b1, w2, b2, w3, b3 = params
    h1s = jnp.maximum(src @ w1 + b1, 0.0)
    h1t = jnp.maximum(tar @ w1 + b1, 0.0)
    h2s = jnp.maximum(h1s @ w2 + b2, 0.0)
    h2t = jnp.maximum(h1t @ w2 + b2, 0.0)
    y = jax.nn.softmax(h2s @ w3 + b3, axis=1)
    return y, h1s, h1t, h2s, h2t


# --------------------------------------------------------------------------
# Smoke test
# --------------------------------------------------------------------------
if __name__ == "__main__":
    key = jax.random.PRNGKey(0)
    kp, ks, kt = jax.random.split(key, 3)

    params = init_params(kp)

    # Small, unequal batches exercise the two-call (ragged) path; B is not a
    # multiple of the 16-row alignment, exercising the partial-block path.
    B, Bt = 24, 8
    src = jax.random.normal(ks, (B, N_INPUT), jnp.float32)
    tar = jax.random.normal(kt, (Bt, N_INPUT), jnp.float32)

    refs = reference_forward(src, tar, params)

    # Default (benchmarked) path: bf16 mmd features, unequal batches.
    outs_bf16 = jax.block_until_ready(dann1_forward(src, tar, params))
    # Exact float32 path.
    outs_f32 = jax.block_until_ready(
        dann1_forward(src, tar, params, mmd_dtype=jnp.float32))
    # Equal-batch fused single-call path.
    outs_eq = jax.block_until_ready(
        dann1_forward(src, src, params, mmd_dtype=jnp.float32))
    refs_eq = reference_forward(src, src, params)

    for o, r in zip(outs_f32, refs):
        assert o.shape == r.shape, (o.shape, r.shape)
        assert o.dtype == r.dtype, (o.dtype, r.dtype)
        assert jnp.allclose(o, r, atol=1e-5, rtol=1e-5), "f32 unequal-batch mismatch"

    for o, r in zip(outs_eq, refs_eq):
        assert o.shape == r.shape, (o.shape, r.shape)
        assert jnp.allclose(o, r, atol=1e-5, rtol=1e-5), "fused equal-batch mismatch"

    for i, (o, r) in enumerate(zip(outs_bf16, refs)):
        assert o.shape == r.shape, (o.shape, r.shape)
        tol = 1e-5 if i == 0 else 3e-2   # y_src stays f32; mmd features are bf16
        assert jnp.allclose(o.astype(jnp.float32), r, atol=tol, rtol=tol), \
            f"bf16 output {i} mismatch"

    print("KERNEL_OK")
</pallas_src>

<mosaic_0001>
module attributes {stable_mosaic.version = 11 : i64} {
  func.func @dann1_src_kernel(%arg0: i32, %arg1: memref<16x11xf32, #tpu.memory_space<vmem>>, %arg2: memref<11x256xf32, #tpu.memory_space<vmem>>, %arg3: memref<1x256xf32, #tpu.memory_space<vmem>>, %arg4: memref<256x128xf32, #tpu.memory_space<vmem>>, %arg5: memref<1x128xf32, #tpu.memory_space<vmem>>, %arg6: memref<128x2xf32, #tpu.memory_space<vmem>>, %arg7: memref<1x2xf32, #tpu.memory_space<vmem>>, %arg8: memref<16x2xf32, #tpu.memory_space<vmem>>, %arg9: memref<16x256xbf16, #tpu.memory_space<vmem>>, %arg10: memref<16x128xbf16, #tpu.memory_space<vmem>>) attributes {dimension_semantics = [#tpu.dimension_semantics<parallel>], iteration_bounds = array<i64: 2>, scalar_prefetch = 0 : i64, scratch_operands = 0 : i64, tpu.core_type = #tpu.core_type<tc>, window_params = [{transform_indices = @transform_0, window_bounds = array<i64: 16, 11>}, {pipeline_mode = #tpu.pipeline_mode<synchronous>, transform_indices = @transform_1, window_bounds = array<i64: 11, 256>}, {pipeline_mode = #tpu.pipeline_mode<synchronous>, transform_indices = @transform_2, window_bounds = array<i64: 1, 256>}, {pipeline_mode = #tpu.pipeline_mode<synchronous>, transform_indices = @transform_3, window_bounds = array<i64: 256, 128>}, {pipeline_mode = #tpu.pipeline_mode<synchronous>, transform_indices = @transform_4, window_bounds = array<i64: 1, 128>}, {pipeline_mode = #tpu.pipeline_mode<synchronous>, transform_indices = @transform_5, window_bounds = array<i64: 128, 2>}, {pipeline_mode = #tpu.pipeline_mode<synchronous>, transform_indices = @transform_6, window_bounds = array<i64: 1, 2>}, {transform_indices = @transform_7, window_bounds = array<i64: 16, 2>}, {transform_indices = @transform_8, window_bounds = array<i64: 16, 256>}, {transform_indices = @transform_9, window_bounds = array<i64: 16, 128>}]} {
    %c0 = arith.constant 0 : index
    %c0_0 = arith.constant 0 : index
    %0 = vector.load %arg1[%c0, %c0_0] : memref<16x11xf32, #tpu.memory_space<vmem>>, vector<16x11xf32>
    %c0_1 = arith.constant 0 : index
    %c0_2 = arith.constant 0 : index
    %1 = vector.load %arg2[%c0_1, %c0_2] : memref<11x256xf32, #tpu.memory_space<vmem>>, vector<11x256xf32>
    %c0_3 = arith.constant 0 : index
    %c0_4 = arith.constant 0 : index
    %2 = vector.load %arg3[%c0_3, %c0_4] : memref<1x256xf32, #tpu.memory_space<vmem>>, vector<1x256xf32>
    %c0_5 = arith.constant 0 : index
    %c0_6 = arith.constant 0 : index
    %3 = vector.load %arg4[%c0_5, %c0_6] : memref<256x128xf32, #tpu.memory_space<vmem>>, vector<256x128xf32>
    %c0_7 = arith.constant 0 : index
    %c0_8 = arith.constant 0 : index
    %4 = vector.load %arg5[%c0_7, %c0_8] : memref<1x128xf32, #tpu.memory_space<vmem>>, vector<1x128xf32>
    %cst = arith.constant dense<0.000000e+00> : vector<16x256xf32>
    %5 = tpu.matmul %0, %1, %cst {dimension_numbers = #tpu.dot_dimension_numbers<[1], [0], [0], [1], [0, 0, 1, 1], [], []>} : vector<16x11xf32>, vector<11x256xf32>, vector<16x256xf32> -> vector<16x256xf32>
    %6 = vector.broadcast %2 : vector<1x256xf32> to vector<16x256xf32>
    %7 = arith.addf %5, %6 : vector<16x256xf32>
    %cst_9 = arith.constant 0.000000e+00 : f32
    %8 = vector.broadcast %cst_9 : f32 to vector<16x256xf32>
    %9 = arith.maximumf %7, %8 : vector<16x256xf32>
    %cst_10 = arith.constant dense<0.000000e+00> : vector<16x128xf32>
    %10 = tpu.matmul %9, %3, %cst_10 {dimension_numbers = #tpu.dot_dimension_numbers<[1], [0], [0], [1], [0, 0, 1, 1], [], []>} : vector<16x256xf32>, vector<256x128xf32>, vector<16x128xf32> -> vector<16x128xf32>
    %11 = vector.broadcast %4 : vector<1x128xf32> to vector<16x128xf32>
    %12 = arith.addf %10, %11 : vector<16x128xf32>
    %cst_11 = arith.constant 0.000000e+00 : f32
    %13 = vector.broadcast %cst_11 : f32 to vector<16x128xf32>
    %14 = arith.maximumf %12, %13 : vector<16x128xf32>
    %15 = arith.truncf %9 : vector<16x256xf32> to vector<16x256xbf16>
    %c0_12 = arith.constant 0 : index
    %c0_13 = arith.constant 0 : index
    %16 = vector.load %arg9[%c0_12, %c0_13] : memref<16x256xbf16, #tpu.memory_space<vmem>>, vector<16x256xbf16>
    tpu.vector_store %arg9[%c0_12, %c0_13], %15 {strides = array<i32>} : memref<16x256xbf16, #tpu.memory_space<vmem>>, vector<16x256xbf16>,
    %17 = arith.truncf %14 : vector<16x128xf32> to vector<16x128xbf16>
    %c0_14 = arith.constant 0 : index
    %c0_15 = arith.constant 0 : index
    %18 = vector.load %arg10[%c0_14, %c0_15] : memref<16x128xbf16, #tpu.memory_space<vmem>>, vector<16x128xbf16>
    tpu.vector_store %arg10[%c0_14, %c0_15], %17 {strides = array<i32>} : memref<16x128xbf16, #tpu.memory_space<vmem>>, vector<16x128xbf16>,
    %c0_16 = arith.constant 0 : index
    %c0_17 = arith.constant 0 : index
    %19 = vector.load %arg6[%c0_16, %c0_17] : memref<128x2xf32, #tpu.memory_space<vmem>>, vector<128x2xf32>
    %c0_18 = arith.constant 0 : index
    %c0_19 = arith.constant 0 : index
    %20 = vector.load %arg7[%c0_18, %c0_19] : memref<1x2xf32, #tpu.memory_space<vmem>>, vector<1x2xf32>
    %cst_20 = arith.constant dense<0.000000e+00> : vector<16x2xf32>
    %21 = tpu.matmul %14, %19, %cst_20 {dimension_numbers = #tpu.dot_dimension_numbers<[1], [0], [0], [1], [0, 0, 1, 1], [], []>} : vector<16x128xf32>, vector<128x2xf32>, vector<16x2xf32> -> vector<16x2xf32>
    %22 = vector.broadcast %20 : vector<1x2xf32> to vector<16x2xf32>
    %23 = arith.addf %21, %22 : vector<16x2xf32>
    %cst_21 = arith.constant dense<0xFF800000> : vector<16xf32>
    %24 = vector.multi_reduction <maximumf>, %23, %cst_21 [1] : vector<16x2xf32> to vector<16xf32>
    %25 = vector.shape_cast %24 : vector<16xf32> to vector<16x1xf32>
    %26 = vector.broadcast %25 : vector<16x1xf32> to vector<16x2xf32>
    %27 = arith.subf %23, %26 : vector<16x2xf32>
    %28 = math.exp %27 : vector<16x2xf32>
    %cst_22 = arith.constant dense<0.000000e+00> : vector<16xf32>
    %29 = vector.multi_reduction <add>, %28, %cst_22 [1] : vector<16x2xf32> to vector<16xf32>
    %30 = vector.shape_cast %29 : vector<16xf32> to vector<16x1xf32>
    %31 = vector.broadcast %30 : vector<16x1xf32> to vector<16x2xf32>
    %32 = arith.divf %28, %31 : vector<16x2xf32>
    %c0_23 = arith.constant 0 : index
    %c0_24 = arith.constant 0 : index
    %33 = vector.load %arg8[%c0_23, %c0_24] : memref<16x2xf32, #tpu.memory_space<vmem>>, vector<16x2xf32>
    tpu.vector_store %arg8[%c0_23, %c0_24], %32 {strides = array<i32>} : memref<16x2xf32, #tpu.memory_space<vmem>>, vector<16x2xf32>,
    return
  }
  func.func @transform_0(%arg0: i32) -> (i32, i32) {
    %c0_i32 = arith.constant 0 : i32
    %c0_i32_0 = arith.constant 0 : i32
    return %arg0, %c0_i32 : i32, i32
  }
  func.func @transform_1(%arg0: i32) -> (i32, i32) {
    %c0_i32 = arith.constant 0 : i32
    %c0_i32_0 = arith.constant 0 : i32
    %c0_i32_1 = arith.constant 0 : i32
    return %c0_i32, %c0_i32_0 : i32, i32
  }
  func.func @transform_2(%arg0: i32) -> (i32, i32) {
    %c0_i32 = arith.constant 0 : i32
    %c0_i32_0 = arith.constant 0 : i32
    %c0_i32_1 = arith.constant 0 : i32
    return %c0_i32, %c0_i32_0 : i32, i32
  }
  func.func @transform_3(%arg0: i32) -> (i32, i32) {
    %c0_i32 = arith.constant 0 : i32
    %c0_i32_0 = arith.constant 0 : i32
    %c0_i32_1 = arith.constant 0 : i32
    return %c0_i32, %c0_i32_0 : i32, i32
  }
  func.func @transform_4(%arg0: i32) -> (i32, i32) {
    %c0_i32 = arith.constant 0 : i32
    %c0_i32_0 = arith.constant 0 : i32
    %c0_i32_1 = arith.constant 0 : i32
    return %c0_i32, %c0_i32_0 : i32, i32
  }
  func.func @transform_5(%arg0: i32) -> (i32, i32) {
    %c0_i32 = arith.constant 0 : i32
    %c0_i32_0 = arith.constant 0 : i32
    %c0_i32_1 = arith.constant 0 : i32
    return %c0_i32, %c0_i32_0 : i32, i32
  }
  func.func @transform_6(%arg0: i32) -> (i32, i32) {
    %c0_i32 = arith.constant 0 : i32
    %c0_i32_0 = arith.constant 0 : i32
    %c0_i32_1 = arith.constant 0 : i32
    return %c0_i32, %c0_i32_0 : i32, i32
  }
  func.func @transform_7(%arg0: i32) -> (i32, i32) {
    %c0_i32 = arith.constant 0 : i32
    %c0_i32_0 = arith.constant 0 : i32
    return %arg0, %c0_i32 : i32, i32
  }
  func.func @transform_8(%arg0: i32) -> (i32, i32) {
    %c0_i32 = arith.constant 0 : i32
    %c0_i32_0 = arith.constant 0 : i32
    return %arg0, %c0_i32 : i32, i32
  }
  func.func @transform_9(%arg0: i32) -> (i32, i32) {
    %c0_i32 = arith.constant 0 : i32
    %c0_i32_0 = arith.constant 0 : i32
    return %arg0, %c0_i32 : i32, i32
  }
}

module attributes {stable_mosaic.version = 11 : i64} {
  func.func @dann1_tar_kernel(%arg0: i32, %arg1: memref<16x11xf32, #tpu.memory_space<vmem>>, %arg2: memref<11x256xf32, #tpu.memory_space<vmem>>, %arg3: memref<1x256xf32, #tpu.memory_space<vmem>>, %arg4: memref<256x128xf32, #tpu.memory_space<vmem>>, %arg5: memref<1x128xf32, #tpu.memory_space<vmem>>, %arg6: memref<16x256xbf16, #tpu.memory_space<vmem>>, %arg7: memref<16x128xbf16, #tpu.memory_space<vmem>>) attributes {dimension_semantics = [#tpu.dimension_semantics<parallel>], iteration_bounds = array<i64: 1>, scalar_prefetch = 0 : i64, scratch_operands = 0 : i64, tpu.core_type = #tpu.core_type<tc>, window_params = [{transform_indices = @transform_0, window_bounds = array<i64: 16, 11>}, {pipeline_mode = #tpu.pipeline_mode<synchronous>, transform_indices = @transform_1, window_bounds = array<i64: 11, 256>}, {pipeline_mode = #tpu.pipeline_mode<synchronous>, transform_indices = @transform_2, window_bounds = array<i64: 1, 256>}, {pipeline_mode = #tpu.pipeline_mode<synchronous>, transform_indices = @transform_3, window_bounds = array<i64: 256, 128>}, {pipeline_mode = #tpu.pipeline_mode<synchronous>, transform_indices = @transform_4, window_bounds = array<i64: 1, 128>}, {transform_indices = @transform_5, window_bounds = array<i64: 16, 256>}, {transform_indices = @transform_6, window_bounds = array<i64: 16, 128>}]} {
    %c0 = arith.constant 0 : index
    %c0_0 = arith.constant 0 : index
    %0 = vector.load %arg1[%c0, %c0_0] : memref<16x11xf32, #tpu.memory_space<vmem>>, vector<16x11xf32>
    %c0_1 = arith.constant 0 : index
    %c0_2 = arith.constant 0 : index
    %1 = vector.load %arg2[%c0_1, %c0_2] : memref<11x256xf32, #tpu.memory_space<vmem>>, vector<11x256xf32>
    %c0_3 = arith.constant 0 : index
    %c0_4 = arith.constant 0 : index
    %2 = vector.load %arg3[%c0_3, %c0_4] : memref<1x256xf32, #tpu.memory_space<vmem>>, vector<1x256xf32>
    %c0_5 = arith.constant 0 : index
    %c0_6 = arith.constant 0 : index
    %3 = vector.load %arg4[%c0_5, %c0_6] : memref<256x128xf32, #tpu.memory_space<vmem>>, vector<256x128xf32>
    %c0_7 = arith.constant 0 : index
    %c0_8 = arith.constant 0 : index
    %4 = vector.load %arg5[%c0_7, %c0_8] : memref<1x128xf32, #tpu.memory_space<vmem>>, vector<1x128xf32>
    %cst = arith.constant dense<0.000000e+00> : vector<16x256xf32>
    %5 = tpu.matmul %0, %1, %cst {dimension_numbers = #tpu.dot_dimension_numbers<[1], [0], [0], [1], [0, 0, 1, 1], [], []>} : vector<16x11xf32>, vector<11x256xf32>, vector<16x256xf32> -> vector<16x256xf32>
    %6 = vector.broadcast %2 : vector<1x256xf32> to vector<16x256xf32>
    %7 = arith.addf %5, %6 : vector<16x256xf32>
    %cst_9 = arith.constant 0.000000e+00 : f32
    %8 = vector.broadcast %cst_9 : f32 to vector<16x256xf32>
    %9 = arith.maximumf %7, %8 : vector<16x256xf32>
    %cst_10 = arith.constant dense<0.000000e+00> : vector<16x128xf32>
    %10 = tpu.matmul %9, %3, %cst_10 {dimension_numbers = #tpu.dot_dimension_numbers<[1], [0], [0], [1], [0, 0, 1, 1], [], []>} : vector<16x256xf32>, vector<256x128xf32>, vector<16x128xf32> -> vector<16x128xf32>
    %11 = vector.broadcast %4 : vector<1x128xf32> to vector<16x128xf32>
    %12 = arith.addf %10, %11 : vector<16x128xf32>
    %cst_11 = arith.constant 0.000000e+00 : f32
    %13 = vector.broadcast %cst_11 : f32 to vector<16x128xf32>
    %14 = arith.maximumf %12, %13 : vector<16x128xf32>
    %15 = arith.truncf %9 : vector<16x256xf32> to vector<16x256xbf16>
    %c0_12 = arith.constant 0 : index
    %c0_13 = arith.constant 0 : index
    %16 = vector.load %arg6[%c0_12, %c0_13] : memref<16x256xbf16, #tpu.memory_space<vmem>>, vector<16x256xbf16>
    tpu.vector_store %arg6[%c0_12, %c0_13], %15 {strides = array<i32>} : memref<16x256xbf16, #tpu.memory_space<vmem>>, vector<16x256xbf16>,
    %17 = arith.truncf %14 : vector<16x128xf32> to vector<16x128xbf16>
    %c0_14 = arith.constant 0 : index
    %c0_15 = arith.constant 0 : index
    %18 = vector.load %arg7[%c0_14, %c0_15] : memref<16x128xbf16, #tpu.memory_space<vmem>>, vector<16x128xbf16>
    tpu.vector_store %arg7[%c0_14, %c0_15], %17 {strides = array<i32>} : memref<16x128xbf16, #tpu.memory_space<vmem>>, vector<16x128xbf16>,
    return
  }
  func.func @transform_0(%arg0: i32) -> (i32, i32) {
    %c0_i32 = arith.constant 0 : i32
    %c0_i32_0 = arith.constant 0 : i32
    return %arg0, %c0_i32 : i32, i32
  }
  func.func @transform_1(%arg0: i32) -> (i32, i32) {
    %c0_i32 = arith.constant 0 : i32
    %c0_i32_0 = arith.constant 0 : i32
    %c0_i32_1 = arith.constant 0 : i32
    return %c0_i32, %c0_i32_0 : i32, i32
  }
  func.func @transform_2(%arg0: i32) -> (i32, i32) {
    %c0_i32 = arith.constant 0 : i32
    %c0_i32_0 = arith.constant 0 : i32
    %c0_i32_1 = arith.constant 0 : i32
    return %c0_i32, %c0_i32_0 : i32, i32
  }
  func.func @transform_3(%arg0: i32) -> (i32, i32) {
    %c0_i32 = arith.constant 0 : i32
    %c0_i32_0 = arith.constant 0 : i32
    %c0_i32_1 = arith.constant 0 : i32
    return %c0_i32, %c0_i32_0 : i32, i32
  }
  func.func @transform_4(%arg0: i32) -> (i32, i32) {
    %c0_i32 = arith.constant 0 : i32
    %c0_i32_0 = arith.constant 0 : i32
    %c0_i32_1 = arith.constant 0 : i32
    return %c0_i32, %c0_i32_0 : i32, i32
  }
  func.func @transform_5(%arg0: i32) -> (i32, i32) {
    %c0_i32 = arith.constant 0 : i32
    %c0_i32_0 = arith.constant 0 : i32
    return %arg0, %c0_i32 : i32, i32
  }
  func.func @transform_6(%arg0: i32) -> (i32, i32) {
    %c0_i32 = arith.constant 0 : i32
    %c0_i32_0 = arith.constant 0 : i32
    return %arg0, %c0_i32 : i32, i32
  }
}

</mosaic_0001>

<llo_original>
// kernel: dann1_forward.2
$region0: #{dann1_forward.2}
  #allocation0 [shape = 'u32[]', space=smem, size = 0x4, offset = 0x4, fixed_abs, tag = 'smem constant byte address 0x4 - core index']
  #allocation1 [shape = 'u32[144,128]{1,0:T(1,128)}', space=vmem, size = 0x12000, scoped, tag = 'internal scratch']
  %s0 = inlined_call_operand.vmem [shape: f32[24,11], index: 0, kind: input, shape index: {}]
  %s1 = inlined_call_operand.vmem [shape: f32[11,256], index: 1, kind: input, shape index: {}]
  %s2 = inlined_call_operand.vmem [shape: f32[1,256], index: 2, kind: input, shape index: {}]
  %s3 = inlined_call_operand.hbm [shape: f32[256,128], index: 3, kind: input, shape index: {}]
  %s4 = inlined_call_operand.vmem [shape: f32[1,128], index: 4, kind: input, shape index: {}]
  %s5 = inlined_call_operand.vmem [shape: f32[128,2], index: 5, kind: input, shape index: {}]
  %s6 = inlined_call_operand.vmem [shape: f32[1,2], index: 6, kind: input, shape index: {}]
  %s7 = inlined_call_operand.vmem [shape: f32[24,2], index: 7, kind: output, shape index: {0}]
  %s8 = inlined_call_operand.hbm [shape: bf16[24,256], index: 8, kind: output, shape index: {1}]
  %s9 = inlined_call_operand.hbm [shape: bf16[24,128], index: 9, kind: output, shape index: {2}]
  %10 = xla_tuple %s7, %s8, %s9
  %s11 = sld [smem:[#allocation0]]
  $region129: #{dann1_forward.2} parent=0
    _
  %s13 = ssub.s32 1, %s11
  %s14 = scalar_select 0, %s13, %s11
  $region1: #{dann1_forward.2} parent=0
    #allocation2 [shape = 'u8[131072]{0}', space=vmem, size = 0x20000, scoped, tag = 'input window, operand 3, single buffered']
    #allocation3 [shape = 's32[2]{0}', space=sflag, size = 0x8, scoped, tag = 'scoped memory for dann1_forward.2']
    #allocation4 [shape = 's32[2]{0}', space=sflag, size = 0x8, scoped, tag = 'scoped memory for dann1_forward.2']
    #allocation5 [shape = 'u8[16384]{0}', space=vmem, size = 0x4000, scoped, tag = 'output window, operand 0']
    #allocation6 [shape = 'u8[16384]{0}', space=vmem, size = 0x4000, scoped, tag = 'output window, operand 1']
    #allocation7 [shape = 'u8[8192]{0}', space=vmem, size = 0x2000, scoped, tag = 'output window, operand 2']
    #allocation8 [shape = 's32[2]{0}', space=sflag, size = 0x8, scoped, tag = 'scoped memory for dann1_forward.2']
    %15 = vsyncpa [#allocation3], 0
    %16 = vsyncpa [#allocation4], 0
    %s17 = scalar_lea.sflag [#allocation4], 1
    %18 = vsyncpa %s17, 0
    %19 = vsyncpa [#allocation8], 0
    %s20 = scalar_lea.sflag [#allocation8], 1
    %21 = vsyncpa %s20, 0
    loop: start=0, step=1, limit=4
    $region2: #{dann1_forward.2} parent=1 // loop_pre_header
      _
    $region3: #{dann1_forward.2} parent=1 // loop_header
      %s23 = sphi 0, %s27
      %p24 = scmp.ge.s32.totalorder %s23, 4
      %s33 = sphi 0, %s35
      %s36 = sphi 0, %s33
      %s37 = sphi 0, %s36
      %s53 = sphi 0, %s37
      %s57 = sphi 0, %s57
      %s59 = sphi 0, %s57
      %s60 = sphi 0, %s59
      %s74 = sphi 0, %s60
      %s78 = sphi 0, %s78
      %s80 = sphi 0, %s78
      %s81 = sphi 0, %s80
      %s95 = sphi 0, %s81
      %s99 = sphi 0, %s99
      %s101 = sphi 0, %s99
      %s102 = sphi 0, %s101
      %s116 = sphi 0, %s102
      %s120 = sphi 0, %s120
      %s122 = sphi 0, %s120
      %s123 = sphi 0, %s122
      %s137 = sphi 0, %s123
      %s141 = sphi 0, %s141
      %s143 = sphi 0, %s141
      %s144 = sphi 0, %s143
      %s158 = sphi 0, %s144
      %s162 = sphi 0, %s162
      %s164 = sphi 0, %s162
      %s165 = sphi 0, %s164
      %s179 = sphi 0, %s165
      %s185 = sphi 0, %s187
      %s188 = sphi 0, %s185
      %s189 = sphi 0, %s188
      %s205 = sphi 0, %s189
      %s211 = sphi 0, %s213
      %s214 = sphi 0, %s211
      %s215 = sphi 0, %s214
      %s231 = sphi 0, %s215
      %s237 = sphi 0, %s239
      %s240 = sphi 0, %s237
      %s241 = sphi 0, %s240
      %s257 = sphi 0, %s241
    $region4: #{dann1_forward.2} parent=1 // loop_header_branch
      %26 = sbr.rel (%p24) target = $region8
    $region5: #{dann1_forward.2} parent=1 // loop_body
      %s28 = ssub.s32 %s23, 1
      %s29 = ssub.s32 %s23, 2
      %s30 = sadd.s32 %s23, 1
      %s31 = ssub.s32 %s23, %s30
      %p32 = scmp.eq.s32.totalorder %s31, 0
      %s34 = sadd.s32 %s33, 1
      %s35 = scalar_select %p32, %s33, %s34
      %p38 = pneg %p32
      %p39 = scmp.eq.s32.totalorder %s23, 1
      %p40 = por %p38, %p39
      %p41 = scmp.ne.s32.totalorder %s33, %s36
      %p42 = scmp.eq.s32.totalorder %s23, 0
      %p43 = por %p41, %p42
      %p44 = scmp.ne.s32.totalorder %s33, %s36
      %p45 = scmp.eq.s32.totalorder %s28, 1
      %p46 = por %p44, %p45
      %p47 = scmp.ne.s32.totalorder %s36, %s37
      %p48 = scmp.eq.s32.totalorder %s28, 0
      %p49 = por %p47, %p48
      %p50 = scmp.ne.s32.totalorder %s36, %s37
      %p51 = scmp.eq.s32.totalorder %s29, 1
      %p52 = por %p50, %p51
      %p54 = scmp.ne.s32.totalorder %s37, %s53
      %p55 = scmp.eq.s32.totalorder %s29, 0
      %p56 = por %p54, %p55
      %s58 = sadd.s32 %s57, 1
      %p61 = scmp.eq.s32.totalorder %s23, 1
      %p62 = scmp.ne.s32.totalorder %s57, %s59
      %p63 = scmp.eq.s32.totalorder %s23, 0
      %p64 = por %p62, %p63
      %p65 = scmp.ne.s32.totalorder %s57, %s59
      %p66 = scmp.eq.s32.totalorder %s28, 1
      %p67 = por %p65, %p66
      %p68 = scmp.ne.s32.totalorder %s59, %s60
      %p69 = scmp.eq.s32.totalorder %s28, 0
      %p70 = por %p68, %p69
      %p71 = scmp.ne.s32.totalorder %s59, %s60
      %p72 = scmp.eq.s32.totalorder %s29, 1
      %p73 = por %p71, %p72
      %p75 = scmp.ne.s32.totalorder %s60, %s74
      %p76 = scmp.eq.s32.totalorder %s29, 0
      %p77 = por %p75, %p76
      %s79 = sadd.s32 %s78, 1
      %p82 = scmp.eq.s32.totalorder %s23, 1
      %p83 = scmp.ne.s32.totalorder %s78, %s80
      %p84 = scmp.eq.s32.totalorder %s23, 0
      %p85 = por %p83, %p84
      %p86 = scmp.ne.s32.totalorder %s78, %s80
      %p87 = scmp.eq.s32.totalorder %s28, 1
      %p88 = por %p86, %p87
      %p89 = scmp.ne.s32.totalorder %s80, %s81
      %p90 = scmp.eq.s32.totalorder %s28, 0
      %p91 = por %p89, %p90
      %p92 = scmp.ne.s32.totalorder %s80, %s81
      %p93 = scmp.eq.s32.totalorder %s29, 1
      %p94 = por %p92, %p93
      %p96 = scmp.ne.s32.totalorder %s81, %s95
      %p97 = scmp.eq.s32.totalorder %s29, 0
      %p98 = por %p96, %p97
      %s100 = sadd.s32 %s99, 1
      %p103 = scmp.eq.s32.totalorder %s23, 1
      %p104 = scmp.ne.s32.totalorder %s99, %s101
      %p105 = scmp.eq.s32.totalorder %s23, 0
      %p106 = por %p104, %p105
      %p107 = scmp.ne.s32.totalorder %s99, %s101
      %p108 = scmp.eq.s32.totalorder %s28, 1
      %p109 = por %p107, %p108
      %p110 = scmp.ne.s32.totalorder %s101, %s102
      %p111 = scmp.eq.s32.totalorder %s28, 0
      %p112 = por %p110, %p111
      %p113 = scmp.ne.s32.totalorder %s101, %s102
      %p114 = scmp.eq.s32.totalorder %s29, 1
      %p115 = por %p113, %p114
      %p117 = scmp.ne.s32.totalorder %s102, %s116
      %p118 = scmp.eq.s32.totalorder %s29, 0
      %p119 = por %p117, %p118
      %s121 = sadd.s32 %s120, 1
      %p124 = scmp.eq.s32.totalorder %s23, 1
      %p125 = scmp.ne.s32.totalorder %s120, %s122
      %p126 = scmp.eq.s32.totalorder %s23, 0
      %p127 = por %p125, %p126
      %p128 = scmp.ne.s32.totalorder %s120, %s122
      %p129 = scmp.eq.s32.totalorder %s28, 1
      %p130 = por %p128, %p129
      %p131 = scmp.ne.s32.totalorder %s122, %s123
      %p132 = scmp.eq.s32.totalorder %s28, 0
      %p133 = por %p131, %p132
      %p134 = scmp.ne.s32.totalorder %s122, %s123
      %p135 = scmp.eq.s32.totalorder %s29, 1
      %p136 = por %p134, %p135
      %p138 = scmp.ne.s32.totalorder %s123, %s137
      %p139 = scmp.eq.s32.totalorder %s29, 0
      %p140 = por %p138, %p139
      %s142 = sadd.s32 %s141, 1
      %p145 = scmp.eq.s32.totalorder %s23, 1
      %p146 = scmp.ne.s32.totalorder %s141, %s143
      %p147 = scmp.eq.s32.totalorder %s23, 0
      %p148 = por %p146, %p147
      %p149 = scmp.ne.s32.totalorder %s141, %s143
      %p150 = scmp.eq.s32.totalorder %s28, 1
      %p151 = por %p149, %p150
      %p152 = scmp.ne.s32.totalorder %s143, %s144
      %p153 = scmp.eq.s32.totalorder %s28, 0
      %p154 = por %p152, %p153
      %p155 = scmp.ne.s32.totalorder %s143, %s144
      %p156 = scmp.eq.s32.totalorder %s29, 1
      %p157 = por %p155, %p156
      %p159 = scmp.ne.s32.totalorder %s144, %s158
      %p160 = scmp.eq.s32.totalorder %s29, 0
      %p161 = por %p159, %p160
      %s163 = sadd.s32 %s162, 1
      %p166 = scmp.eq.s32.totalorder %s23, 1
      %p167 = scmp.ne.s32.totalorder %s162, %s164
      %p168 = scmp.eq.s32.totalorder %s23, 0
      %p169 = por %p167, %p168
      %p170 = scmp.ne.s32.totalorder %s162, %s164
      %p171 = scmp.eq.s32.totalorder %s28, 1
      %p172 = por %p170, %p171
      %p173 = scmp.ne.s32.totalorder %s164, %s165
      %p174 = scmp.eq.s32.totalorder %s28, 0
      %p175 = por %p173, %p174
      %p176 = scmp.ne.s32.totalorder %s164, %s165
      %p177 = scmp.eq.s32.totalorder %s29, 1
      %p178 = por %p176, %p177
      %p180 = scmp.ne.s32.totalorder %s165, %s179
      %p181 = scmp.eq.s32.totalorder %s29, 0
      %p182 = por %p180, %p181
      %s183 = ssub.s32 %s23, %s30
      %p184 = scmp.eq.s32.totalorder %s183, 0
      %s186 = sadd.s32 %s185, 1
      %s187 = scalar_select %p184, %s185, %s186
      %p190 = pneg %p184
      %p191 = scmp.eq.s32.totalorder %s23, 1
      %p192 = por %p190, %p191
      %p193 = scmp.ne.s32.totalorder %s185, %s188
      %p194 = scmp.eq.s32.totalorder %s23, 0
      %p195 = por %p193, %p194
      %p196 = scmp.ne.s32.totalorder %s185, %s188
      %p197 = scmp.eq.s32.totalorder %s28, 1
      %p198 = por %p196, %p197
      %p199 = scmp.ne.s32.totalorder %s188, %s189
      %p200 = scmp.eq.s32.totalorder %s28, 0
      %p201 = por %p199, %p200
      %p202 = scmp.ne.s32.totalorder %s188, %s189
      %p203 = scmp.eq.s32.totalorder %s29, 1
      %p204 = por %p202, %p203
      %p206 = scmp.ne.s32.totalorder %s189, %s205
      %p207 = scmp.eq.s32.totalorder %s29, 0
      %p208 = por %p206, %p207
      %s209 = ssub.s32 %s23, %s30
      %p210 = scmp.eq.s32.totalorder %s209, 0
      %s212 = sadd.s32 %s211, 1
      %s213 = scalar_select %p210, %s211, %s212
      %p216 = pneg %p210
      %p217 = scmp.eq.s32.totalorder %s23, 1
      %p218 = por %p216, %p217
      %p219 = scmp.ne.s32.totalorder %s211, %s214
      %p220 = scmp.eq.s32.totalorder %s23, 0
      %p221 = por %p219, %p220
      %p222 = scmp.ne.s32.totalorder %s211, %s214
      %p223 = scmp.eq.s32.totalorder %s28, 1
      %p224 = por %p222, %p223
      %p225 = scmp.ne.s32.totalorder %s214, %s215
      %p226 = scmp.eq.s32.totalorder %s28, 0
      %p227 = por %p225, %p226
      %p228 = scmp.ne.s32.totalorder %s214, %s215
      %p229 = scmp.eq.s32.totalorder %s29, 1
      %p230 = por %p228, %p229
      %p232 = scmp.ne.s32.totalorder %s215, %s231
      %p233 = scmp.eq.s32.totalorder %s29, 0
      %p234 = por %p232, %p233
      %s235 = ssub.s32 %s23, %s30
      %p236 = scmp.eq.s32.totalorder %s235, 0
      %s238 = sadd.s32 %s237, 1
      %s239 = scalar_select %p236, %s237, %s238
      %p242 = pneg %p236
      %p243 = scmp.eq.s32.totalorder %s23, 1
      %p244 = por %p242, %p243
      %p245 = scmp.ne.s32.totalorder %s237, %s240
      %p246 = scmp.eq.s32.totalorder %s23, 0
      %p247 = por %p245, %p246
      %p248 = scmp.ne.s32.totalorder %s237, %s240
      %p249 = scmp.eq.s32.totalorder %s28, 1
      %p250 = por %p248, %p249
      %p251 = scmp.ne.s32.totalorder %s240, %s241
      %p252 = scmp.eq.s32.totalorder %s28, 0
      %p253 = por %p251, %p252
      %p254 = scmp.ne.s32.totalorder %s240, %s241
      %p255 = scmp.eq.s32.totalorder %s29, 1
      %p256 = por %p254, %p255
      %p258 = scmp.ne.s32.totalorder %s241, %s257
      %p259 = scmp.eq.s32.totalorder %s29, 0
      %p260 = por %p258, %p259
      %p261 = scmp.le.s32.totalorder 1, %s23
      %p262 = scmp.lt.s32.totalorder %s23, 3
      %p263 = pnand %p261, %p262
      %p264 = pneg %p263
      // Predicated region
      $region9: #{dann1_forward.2} parent=5 // pred_check
        _
      $region10: #{dann1_forward.2} parent=5 // pred_check_branch
        %266 = sbr.rel (%p263) target = $region12
      $region11: #{dann1_forward.2} parent=5 // pred_region
        %s267 = ssub.s32 %s23, 1
        // Predicated region
        $region13: #{dann1_forward.2} parent=11 // pred_check
          %p268 = pneg %p70
        $region14: #{dann1_forward.2} parent=11 // pred_check_branch
          %270 = sbr.rel (%p268) target = $region16
        $region15: #{dann1_forward.2} parent=11 // pred_region
          _
        $region16: #{dann1_forward.2} parent=11 // pred_fallthru
          _
        // Predicated region
        $region17: #{dann1_forward.2} parent=11 // pred_check
          %p271 = pneg %p91
        $region18: #{dann1_forward.2} parent=11 // pred_check_branch
          %273 = sbr.rel (%p271) target = $region20
        $region19: #{dann1_forward.2} parent=11 // pred_region
          _
        $region20: #{dann1_forward.2} parent=11 // pred_fallthru
          _
        // Predicated region
        $region21: #{dann1_forward.2} parent=11 // pred_check
          %p274 = pneg %p112
        $region22: #{dann1_forward.2} parent=11 // pred_check_branch
          %276 = sbr.rel (%p274) target = $region24
        $region23: #{dann1_forward.2} parent=11 // pred_region
          %s278 = ssub.s32 4096, 4096
          %279 = vsyncadd [#allocation3], %s278
          %s280 = sshll.u32 [#allocation2], 4
          %s281 = int_to_ptr.vmem [resolvable:$true] %s280
          %286 = dma.hbm_to_vmem [thread:$0]  %s3, 4096, %s281, [#allocation3], 128, 128, 8
        $region24: #{dann1_forward.2} parent=11 // pred_fallthru
          _
        // Predicated region
        $region25: #{dann1_forward.2} parent=11 // pred_check
          %p287 = pneg %p133
        $region26: #{dann1_forward.2} parent=11 // pred_check_branch
          %289 = sbr.rel (%p287) target = $region28
        $region27: #{dann1_forward.2} parent=11 // pred_region
          _
        $region28: #{dann1_forward.2} parent=11 // pred_fallthru
          _
        // Predicated region
        $region29: #{dann1_forward.2} parent=11 // pred_check
          %p290 = pneg %p154
        $region30: #{dann1_forward.2} parent=11 // pred_check_branch
          %292 = sbr.rel (%p290) target = $region32
        $region31: #{dann1_forward.2} parent=11 // pred_region
          _
        $region32: #{dann1_forward.2} parent=11 // pred_fallthru
          _
        // Predicated region
        $region33: #{dann1_forward.2} parent=11 // pred_check
          %p293 = pneg %p175
        $region34: #{dann1_forward.2} parent=11 // pred_check_branch
          %295 = sbr.rel (%p293) target = $region36
        $region35: #{dann1_forward.2} parent=11 // pred_region
          _
        $region36: #{dann1_forward.2} parent=11 // pred_fallthru
          _
      $region12: #{dann1_forward.2} parent=5 // pred_fallthru
        _
      %p296 = scmp.lt.s32.totalorder %s23, 2
      // Predicated region
      $region37: #{dann1_forward.2} parent=5 // pred_check
        %p297 = pneg %p296
      $region38: #{dann1_forward.2} parent=5 // pred_check_branch
        %299 = sbr.rel (%p297) target = $region40
      $region39: #{dann1_forward.2} parent=5 // pred_region
        // Predicated region
        $region41: #{dann1_forward.2} parent=39 // pred_check
          %p300 = pneg %p43
        $region42: #{dann1_forward.2} parent=39 // pred_check_branch
          %302 = sbr.rel (%p300) target = $region44
        $region43: #{dann1_forward.2} parent=39 // pred_region
          %s303 = smul.u32 2, %s23
          %s304 = ssub.s32 3, %s303
          %p305 = scmp.lt.s32.totalorder %s304, 2
          %s306 = scalar_select %p305, %s304, 2
          %s307 = smul.u32 128, %s306
          %p308 = scmp.lt.s32.totalorder %s303, 2
          %s309 = scalar_select %p308, %s303, 2
          %s310 = smul.addr %s309, 8
          %s311 = scalar_lea.vmem %s0, %s310
          %s312 = smul.u32 2, %s23
          %s313 = ssub.s32 3, %s312
          %p314 = scmp.lt.s32.totalorder %s313, 2
          %s315 = scalar_select %p314, %s313, 2
          %s316 = smul.u32 128, %s315
        $region44: #{dann1_forward.2} parent=39 // pred_fallthru
          _
      $region40: #{dann1_forward.2} parent=5 // pred_fallthru
        _
      %p317 = scmp.le.s32.totalorder 1, %s23
      %p318 = scmp.lt.s32.totalorder %s23, 3
      %p319 = pnand %p317, %p318
      %p320 = pneg %p319
      // Predicated region
      $region45: #{dann1_forward.2} parent=5 // pred_check
        _
      $region46: #{dann1_forward.2} parent=5 // pred_check_branch
        %322 = sbr.rel (%p319) target = $region48
      $region47: #{dann1_forward.2} parent=5 // pred_region
        %s323 = ssub.s32 %s23, 1
        // Predicated region
        $region49: #{dann1_forward.2} parent=47 // pred_check
          %p324 = pneg %p112
        $region50: #{dann1_forward.2} parent=47 // pred_check_branch
          %326 = sbr.rel (%p324) target = $region52
        $region51: #{dann1_forward.2} parent=47 // pred_region
          %327 = dma.done [#allocation3], 4096
        $region52: #{dann1_forward.2} parent=47 // pred_fallthru
          _
        %s328 = smul.u32 2, %s28
        %s329 = ssub.s32 3, %s328
        %p330 = scmp.lt.s32.totalorder %s329, 2
        %s331 = scalar_select %p330, %s329, 2
        %s332 = smul.u32 128, %s331
        %p333 = scmp.lt.s32.totalorder %s328, 2
        %s334 = scalar_select %p333, %s328, 2
        %s335 = smul.addr %s334, 8
        %s336 = scalar_lea.vmem %s0, %s335
        %p337 = pneg %p49
        %p338 = pneg %p46
        %p339 = pneg %p70
        %p340 = pneg %p67
        %p341 = pneg %p91
        %p342 = pneg %p88
        %p343 = pneg %p112
        %p344 = pneg %p109
        %p345 = pneg %p133
        %p346 = pneg %p130
        %p347 = pneg %p154
        %p348 = pneg %p151
        %p349 = pneg %p175
        %p350 = pneg %p172
        %p351 = pneg %p201
        %p352 = pneg %p198
        %s353 = sand.u32 %s188, 1
        %s354 = sand.u32 %s188, 1
        %s355 = smul.addr %s354, 16
        %s356 = scalar_lea.vmem [#allocation5], %s355
        %p357 = pneg %p227
        %p358 = pneg %p224
        %s359 = sand.u32 %s214, 1
        %s360 = scalar_lea.sflag [#allocation4], %s359
        %s361 = sand.u32 %s214, 1
        %s362 = smul.addr %s361, 16
        %s363 = scalar_lea.vmem [#allocation6], %s362
        %p364 = pneg %p253
        %p365 = pneg %p250
        %s366 = sand.u32 %s240, 1
        %s367 = scalar_lea.sflag [#allocation8], %s366
        %s368 = sand.u32 %s240, 1
        %s369 = smul.addr %s368, 8
        %s370 = scalar_lea.vmem [#allocation7], %s369
        %s371 = smul.u32 2, %s28
        %s372 = ssub.s32 3, %s371
        %p373 = scmp.lt.s32.totalorder %s372, 2
        %s374 = scalar_select %p373, %s372, 2
        %s375 = smul.u32 128, %s374
        %p376 = scmp.lt.s32.totalorder %s371, 2
        %s377 = scalar_select %p376, %s371, 2
        %s378 = smul.addr %s377, 8
        %s379 = scalar_lea.vmem %s0, %s378
        %s380 = smul.u32 2, %s28
        %s381 = ssub.s32 3, %s380
        %p382 = scmp.lt.s32.totalorder %s381, 2
        %s383 = scalar_select %p382, %s381, 2
        %s384 = smul.u32 128, %s383
        %s385 = smul.u32 2, %s28
        %s386 = ssub.s32 3, %s385
        %p387 = scmp.lt.s32.totalorder %s386, 2
        %s388 = scalar_select %p387, %s386, 2
        %s389 = smul.u32 128, %s388
        %s390 = smul.u32 2, %s28
        %s391 = ssub.s32 3, %s390
        %p392 = scmp.lt.s32.totalorder %s391, 2
        %s393 = scalar_select %p392, %s391, 2
        %s394 = smul.u32 64, %s393
        %s395 = smul.u32 %s394, 2
        %s396 = smul.u32 2, %s28
        %s397 = ssub.s32 3, %s396
        %p398 = scmp.lt.s32.totalorder %s397, 2
        %s399 = scalar_select %p398, %s397, 2
        %s400 = smul.u32 64, %s399
        %v401 = vld [vmem:[%s379] sm:$0xff]
        %v402 = vld [vmem:[%s379 + $0x8] sm:$0xff]
        %v403 = vld [vmem:[%s1] sm:$0xff]
        %v404 = vld [vmem:[%s1 + $0x8] sm:$0xff]
        %v405 = vld [vmem:[%s1 + $0x10] sm:$0x7]
        %v406 = vld [vmem:[%s1 + $0x18] sm:$0x7]
        %v407 = vld [vmem:[%s2] sm:$0x3]
        %v408 = vld [vmem:[#allocation2] sm:$0xff]
        %v409 = vld [vmem:[#allocation2 + $0x8] sm:$0xff]
        %v410 = vld [vmem:[#allocation2 + $0x10] sm:$0xff]
        %v411 = vld [vmem:[#allocation2 + $0x18] sm:$0xff]
        %v412 = vld [vmem:[#allocation2 + $0x20] sm:$0xff]
        %v413 = vld [vmem:[#allocation2 + $0x28] sm:$0xff]
        %v414 = vld [vmem:[#allocation2 + $0x30] sm:$0xff]
        %v415 = vld [vmem:[#allocation2 + $0x38] sm:$0xff]
        %v416 = vld [vmem:[#allocation2 + $0x40] sm:$0xff]
        %v417 = vld [vmem:[#allocation2 + $0x48] sm:$0xff]
        %v418 = vld [vmem:[#allocation2 + $0x50] sm:$0xff]
        %v419 = vld [vmem:[#allocation2 + $0x58] sm:$0xff]
        %v420 = vld [vmem:[#allocation2 + $0x60] sm:$0xff]
        %v421 = vld [vmem:[#allocation2 + $0x68] sm:$0xff]
        %v422 = vld [vmem:[#allocation2 + $0x70] sm:$0xff]
        %v423 = vld [vmem:[#allocation2 + $0x78] sm:$0xff]
        %v424 = vld [vmem:[#allocation2 + $0x80] sm:$0xff]
        %v425 = vld [vmem:[#allocation2 + $0x88] sm:$0xff]
        %v426 = vld [vmem:[#allocation2 + $0x90] sm:$0xff]
        %v427 = vld [vmem:[#allocation2 + $0x98] sm:$0xff]
        %v428 = vld [vmem:[#allocation2 + $0xa0] sm:$0xff]
        %v429 = vld [vmem:[#allocation2 + $0xa8] sm:$0xff]
        %v430 = vld [vmem:[#allocation2 + $0xb0] sm:$0xff]
        %v431 = vld [vmem:[#allocation2 + $0xb8] sm:$0xff]
        %v432 = vld [vmem:[#allocation2 + $0xc0] sm:$0xff]
        %v433 = vld [vmem:[#allocation2 + $0xc8] sm:$0xff]
        %v434 = vld [vmem:[#allocation2 + $0xd0] sm:$0xff]
        %v435 = vld [vmem:[#allocation2 + $0xd8] sm:$0xff]
        %v436 = vld [vmem:[#allocation2 + $0xe0] sm:$0xff]
        %v437 = vld [vmem:[#allocation2 + $0xe8] sm:$0xff]
        %v438 = vld [vmem:[#allocation2 + $0xf0] sm:$0xff]
        %v439 = vld [vmem:[#allocation2 + $0xf8] sm:$0xff]
        %v440 = vld [vmem:[%s4] sm:$0x1]
        %v442 = vlaneseq
        %v443 = vshrl.u32 %v442, 7
        %v444 = vsub.s32 0, %v443
        %v445 = vrot.slane %v407, %v444
        %v446 = vlaneseq
        %v447 = vshrl.u32 %v446, 7
        %v448 = vsub.s32 1, %v447
        %v449 = vrot.slane %v407, %v448
        %vm452 = vcmask 89088
        %v454 = vsel %vm452, %v401, 0
        %v457 = vsel %vm452, %v402, 0
        %vm459 = vcmask 1042432
        %v461 = vsel %vm459, %v405, 0
        %v464 = vsel %vm459, %v406, 0
        %466 = vmatprep.subr.mxu0 %v404
        %467 = vmatpush1.msra.mxu0 %v403
        %468 = vmatprep.subr.mxu0 %v464
        %469 = vmatpush1.msra.mxu0 %v461
        %470 = vmatprep.subr.mxu0 0.0
        %471 = vmatpush1.msra.mxu0 0.0
        %472 = vmatprep.subr.mxu0 0.0
        %473 = vmatpush1.msra.mxu0 0.0
        %474 = vmatprep.subr.mxu0 0.0
        %475 = vmatpush1.msra.mxu0 0.0
        %476 = vmatprep.subr.mxu0 0.0
        %477 = vmatpush1.msra.mxu0 0.0
        %478 = vmatprep.subr.mxu0 0.0
        %479 = vmatpush1.msra.mxu0 0.0
        %480 = vmatprep.subr.mxu0 0.0
        %481 = vmatpush1.msra.mxu0 0.0
        %482 = vmatprep.subr.mxu0 0.0
        %483 = vmatpush1.msra.mxu0 0.0
        %484 = vmatprep.subr.mxu0 0.0
        %485 = vmatpush1.msra.mxu0 0.0
        %486 = vmatprep.subr.mxu0 0.0
        %487 = vmatpush1.msra.mxu0 0.0
        %488 = vmatprep.subr.mxu0 0.0
        %489 = vmatpush1.msra.mxu0 0.0
        %490 = vmatprep.subr.mxu0 0.0
        %491 = vmatpush1.msra.mxu0 0.0
        %492 = vmatprep.subr.mxu0 0.0
        %493 = vmatpush1.msra.mxu0 0.0
        %494 = vmatprep.subr.mxu0 0.0
        %495 = vmatpush1.msra.mxu0 0.0
        %496 = vmatprep.subr.mxu0 0.0
        %497 = vmatpush1.msra.mxu0 0.0
        %498 = vmatprep.subr.mxu0 0.0
        %499 = vmatpush1.msra.mxu0 0.0
        %500 = vmatprep.subr.mxu0 0.0
        %501 = vmatpush1.msra.mxu0 0.0
        %502 = vmatprep.subr.mxu0 0.0
        %503 = vmatpush1.msra.mxu0 0.0
        %504 = vmatprep.subr.mxu0 0.0
        %505 = vmatpush1.msra.mxu0 0.0
        %506 = vmatprep.subr.mxu0 0.0
        %507 = vmatpush1.msra.mxu0 0.0
        %508 = vmatprep.subr.mxu0 0.0
        %509 = vmatpush1.msra.mxu0 0.0
        %510 = vmatprep.subr.mxu0 0.0
        %511 = vmatpush1.msra.mxu0 0.0
        %512 = vmatprep.subr.mxu0 0.0
        %513 = vmatpush1.msra.mxu0 0.0
        %514 = vmatprep.subr.mxu0 0.0
        %515 = vmatpush1.msra.mxu0 0.0
        %516 = vmatprep.subr.mxu0 0.0
        %517 = vmatpush1.msra.mxu0 0.0
        %518 = vmatprep.subr.mxu0 0.0
        %519 = vmatpush1.msra.mxu0 0.0
        %520 = vmatprep.subr.mxu0 0.0
        %521 = vmatpush1.msra.mxu0 0.0
        %522 = vmatprep.subr.mxu0 0.0
        %523 = vmatpush1.msra.mxu0 0.0
        %524 = vmatprep.subr.mxu0 0.0
        %525 = vmatpush1.msra.mxu0 0.0
        %526 = vmatprep.subr.mxu0 0.0
        %527 = vmatpush1.msra.mxu0 0.0
        %528 = vmatprep.subr.mxu0 0.0
        %529 = vmatpush1.msra.mxu0 0.0
        %530 = vmatprep.mubr.f32.mxu0 0.0
        %531 = vmatmul.mubr.f32.gmra.mrb[0].mxu0 %v454
        %v532 = vpop.f32.mrb[0].mxu0
        %v533 = vadd.f32 %v445, %v532
        %v534 = vpop.f32.mrb[0].mxu0
        %v535 = vadd.f32 %v449, %v534
        %536 = vmatprep.mubr.f32.mxu0 0.0
        %537 = vmatmul.mubr.f32.gmra.mrb[0].mxu0 %v457
        %v538 = vpop.f32.mrb[0].mxu0
        %v539 = vadd.f32 %v445, %v538
        %v540 = vpop.f32.mrb[0].mxu0
        %v541 = vadd.f32 %v449, %v540
        %542 = vdwg.mxu0
        %v543 = vmax.f32 %v533, 0.0
        %v544 = vmax.f32 %v535, 0.0
        %v545 = vmax.f32 %v539, 0.0
        %v546 = vmax.f32 %v541, 0.0
        %v548 = vlaneseq
        %v549 = vshrl.u32 %v548, 7
        %v550 = vsub.s32 0, %v549
        %v551 = vrot.slane %v440, %v550
        %553 = vmatprep.subr.mxu0 0.0
        %554 = vmatpush1.msra.mxu0 %v408
        %555 = vmatprep.subr.mxu0 0.0
        %556 = vmatpush1.msra.mxu0 %v409
        %557 = vmatprep.subr.mxu0 0.0
        %558 = vmatpush1.msra.mxu0 %v410
        %559 = vmatprep.subr.mxu0 0.0
        %560 = vmatpush1.msra.mxu0 %v411
        %561 = vmatprep.subr.mxu0 0.0
        %562 = vmatpush1.msra.mxu0 %v412
        %563 = vmatprep.subr.mxu0 0.0
        %564 = vmatpush1.msra.mxu0 %v413
        %565 = vmatprep.subr.mxu0 0.0
        %566 = vmatpush1.msra.mxu0 %v414
        %567 = vmatprep.subr.mxu0 0.0
        %568 = vmatpush1.msra.mxu0 %v415
        %569 = vmatprep.subr.mxu0 0.0
        %570 = vmatpush1.msra.mxu0 %v416
        %571 = vmatprep.subr.mxu0 0.0
        %572 = vmatpush1.msra.mxu0 %v417
        %573 = vmatprep.subr.mxu0 0.0
        %574 = vmatpush1.msra.mxu0 %v418
        %575 = vmatprep.subr.mxu0 0.0
        %576 = vmatpush1.msra.mxu0 %v419
        %577 = vmatprep.subr.mxu0 0.0
        %578 = vmatpush1.msra.mxu0 %v420
        %579 = vmatprep.subr.mxu0 0.0
        %580 = vmatpush1.msra.mxu0 %v421
        %581 = vmatprep.subr.mxu0 0.0
        %582 = vmatpush1.msra.mxu0 %v422
        %583 = vmatprep.subr.mxu0 0.0
        %584 = vmatpush1.msra.mxu0 %v423
        %585 = vmatprep.subr.mxu0 0.0
        %586 = vmatpush1.msra.mxu0 %v424
        %587 = vmatprep.subr.mxu0 0.0
        %588 = vmatpush1.msra.mxu0 %v425
        %589 = vmatprep.subr.mxu0 0.0
        %590 = vmatpush1.msra.mxu0 %v426
        %591 = vmatprep.subr.mxu0 0.0
        %592 = vmatpush1.msra.mxu0 %v427
        %593 = vmatprep.subr.mxu0 0.0
        %594 = vmatpush1.msra.mxu0 %v428
        %595 = vmatprep.subr.mxu0 0.0
        %596 = vmatpush1.msra.mxu0 %v429
        %597 = vmatprep.subr.mxu0 0.0
        %598 = vmatpush1.msra.mxu0 %v430
        %599 = vmatprep.subr.mxu0 0.0
        %600 = vmatpush1.msra.mxu0 %v431
        %601 = vmatprep.subr.mxu0 0.0
        %602 = vmatpush1.msra.mxu0 %v432
        %603 = vmatprep.subr.mxu0 0.0
        %604 = vmatpush1.msra.mxu0 %v433
        %605 = vmatprep.subr.mxu0 0.0
        %606 = vmatpush1.msra.mxu0 %v434
        %607 = vmatprep.subr.mxu0 0.0
        %608 = vmatpush1.msra.mxu0 %v435
        %609 = vmatprep.subr.mxu0 0.0
        %610 = vmatpush1.msra.mxu0 %v436
        %611 = vmatprep.subr.mxu0 0.0
        %612 = vmatpush1.msra.mxu0 %v437
        %613 = vmatprep.subr.mxu0 0.0
        %614 = vmatpush1.msra.mxu0 %v438
        %615 = vmatprep.subr.mxu0 0.0
        %616 = vmatpush1.msra.mxu0 %v439
        %617 = vmatprep.mubr.f32.mxu0 %v544
        %618 = vmatmul.mubr.f32.gmra.mrb[0].mxu0 %v543
        %v619 = vpop.f32.mrb[0].mxu0
        %v620 = vadd.f32 %v551, %v619
        %v621 = vpop.f32.mrb[0].mxu0
        %622 = vmatprep.mubr.f32.mxu0 %v546
        %623 = vmatmul.mubr.f32.gmra.mrb[0].mxu0 %v545
        %v624 = vpop.f32.mrb[0].mxu0
        %v625 = vadd.f32 %v551, %v624
        %v626 = vpop.f32.mrb[0].mxu0
        %627 = vdwg.mxu0
        %v628 = vmax.f32 %v620, 0.0
        %v629 = vmax.f32 %v625, 0.0
        %v630 = vpack.c.bf16 %v545, %v543
        %v631 = vpack.c.bf16 %v546, %v544
        %v634 = vunpack.c.l.b16 %v630
        %v635 = vunpack.c.l.b16 %v631
        %v636 = vunpack.c.h.b16 %v630
        %v637 = vunpack.c.h.b16 %v631
        %v638 = vpack.c.b16 %v635, %v634
        %v639 = vpack.c.b16 %v637, %v636
        %642 = vst [vmem:[%s363] sm:$0xff] %v638
        %643 = vst [vmem:[%s363 + $0x8] sm:$0xff] %v639
        %v644 = vpack.c.bf16 %v629, %v628
        %v646 = vunpack.c.l.b16 %v644
        %v647 = vunpack.c.h.b16 %v644
        %v648 = vpack.c.b16 %v646, %v646
        %v649 = vpack.c.b16 %v647, %v647
        %652 = vst [vmem:[%s370] sm:$0xf] %v648
        %653 = vst [vmem:[%s370 + $0x4] sm:$0xf] %v649
        %v654 = vld [vmem:[%s5] sm:$0xff]
        %v655 = vld [vmem:[%s5 + $0x8] sm:$0xff]
        %v656 = vld [vmem:[%s5 + $0x10] sm:$0xff]
        %v657 = vld [vmem:[%s5 + $0x18] sm:$0xff]
        %v658 = vld [vmem:[%s5 + $0x20] sm:$0xff]
        %v659 = vld [vmem:[%s5 + $0x28] sm:$0xff]
        %v660 = vld [vmem:[%s5 + $0x30] sm:$0xff]
        %v661 = vld [vmem:[%s5 + $0x38] sm:$0xff]
        %v662 = vld [vmem:[%s5 + $0x40] sm:$0xff]
        %v663 = vld [vmem:[%s5 + $0x48] sm:$0xff]
        %v664 = vld [vmem:[%s5 + $0x50] sm:$0xff]
        %v665 = vld [vmem:[%s5 + $0x58] sm:$0xff]
        %v666 = vld [vmem:[%s5 + $0x60] sm:$0xff]
        %v667 = vld [vmem:[%s5 + $0x68] sm:$0xff]
        %v668 = vld [vmem:[%s5 + $0x70] sm:$0xff]
        %v669 = vld [vmem:[%s5 + $0x78] sm:$0xff]
        %v670 = vld [vmem:[%s6] sm:$0x1]
        %v672 = vlaneseq
        %v673 = vshrl.u32 %v672, 7
        %v674 = vsub.s32 0, %v673
        %v675 = vrot.slane %v670, %v674
        %677 = vmatprep.subr.mxu0 0.0
        %678 = vmatpush1.msra.mxu0 %v654
        %679 = vmatprep.subr.mxu0 0.0
        %680 = vmatpush1.msra.mxu0 %v655
        %681 = vmatprep.subr.mxu0 0.0
        %682 = vmatpush1.msra.mxu0 %v656
        %683 = vmatprep.subr.mxu0 0.0
        %684 = vmatpush1.msra.mxu0 %v657
        %685 = vmatprep.subr.mxu0 0.0
        %686 = vmatpush1.msra.mxu0 %v658
        %687 = vmatprep.subr.mxu0 0.0
        %688 = vmatpush1.msra.mxu0 %v659
        %689 = vmatprep.subr.mxu0 0.0
        %690 = vmatpush1.msra.mxu0 %v660
        %691 = vmatprep.subr.mxu0 0.0
        %692 = vmatpush1.msra.mxu0 %v661
        %693 = vmatprep.subr.mxu0 0.0
        %694 = vmatpush1.msra.mxu0 %v662
        %695 = vmatprep.subr.mxu0 0.0
        %696 = vmatpush1.msra.mxu0 %v663
        %697 = vmatprep.subr.mxu0 0.0
        %698 = vmatpush1.msra.mxu0 %v664
        %699 = vmatprep.subr.mxu0 0.0
        %700 = vmatpush1.msra.mxu0 %v665
        %701 = vmatprep.subr.mxu0 0.0
        %702 = vmatpush1.msra.mxu0 %v666
        %703 = vmatprep.subr.mxu0 0.0
        %704 = vmatpush1.msra.mxu0 %v667
        %705 = vmatprep.subr.mxu0 0.0
        %706 = vmatpush1.msra.mxu0 %v668
        %707 = vmatprep.subr.mxu0 0.0
        %708 = vmatpush1.msra.mxu0 %v669
        %709 = vmatprep.subr.mxu0 0.0
        %710 = vmatpush1.msra.mxu0 0.0
        %711 = vmatprep.subr.mxu0 0.0
        %712 = vmatpush1.msra.mxu0 0.0
        %713 = vmatprep.subr.mxu0 0.0
        %714 = vmatpush1.msra.mxu0 0.0
        %715 = vmatprep.subr.mxu0 0.0
        %716 = vmatpush1.msra.mxu0 0.0
        %717 = vmatprep.subr.mxu0 0.0
        %718 = vmatpush1.msra.mxu0 0.0
        %719 = vmatprep.subr.mxu0 0.0
        %720 = vmatpush1.msra.mxu0 0.0
        %721 = vmatprep.subr.mxu0 0.0
        %722 = vmatpush1.msra.mxu0 0.0
        %723 = vmatprep.subr.mxu0 0.0
        %724 = vmatpush1.msra.mxu0 0.0
        %725 = vmatprep.subr.mxu0 0.0
        %726 = vmatpush1.msra.mxu0 0.0
        %727 = vmatprep.subr.mxu0 0.0
        %728 = vmatpush1.msra.mxu0 0.0
        %729 = vmatprep.subr.mxu0 0.0
        %730 = vmatpush1.msra.mxu0 0.0
        %731 = vmatprep.subr.mxu0 0.0
        %732 = vmatpush1.msra.mxu0 0.0
        %733 = vmatprep.subr.mxu0 0.0
        %734 = vmatpush1.msra.mxu0 0.0
        %735 = vmatprep.subr.mxu0 0.0
        %736 = vmatpush1.msra.mxu0 0.0
        %737 = vmatprep.subr.mxu0 0.0
        %738 = vmatpush1.msra.mxu0 0.0
        %739 = vmatprep.subr.mxu0 0.0
        %740 = vmatpush1.msra.mxu0 0.0
        %741 = vmatprep.mubr.f32.mxu0 0.0
        %742 = vmatmul.mubr.f32.gmra.mrb[0].mxu0 %v628
        %v743 = vpop.f32.mrb[0].mxu0
        %v744 = vadd.f32 %v675, %v743
        %v745 = vpop.f32.mrb[0].mxu0
        %746 = vmatprep.mubr.f32.mxu0 0.0
        %747 = vmatmul.mubr.f32.gmra.mrb[0].mxu0 %v629
        %v748 = vpop.f32.mrb[0].mxu0
        %v749 = vadd.f32 %v675, %v748
        %v750 = vpop.f32.mrb[0].mxu0
        %751 = vdwg.mxu0
        %vm752 = vcmask 15360
        %v753 = vsel %vm752, %v744, -inf
        %754 = vmax.xlane.f32.xlu0 %v753
        %v755 = vpop.xlane.xlu0 %754
        %v756 = vsel %vm752, %v749, -inf
        %757 = vmax.xlane.f32.xlu0 %v756
        %v758 = vpop.xlane.xlu0 %757
        %v759 = vsub.f32 %v744, %v755
        %v760 = vsub.f32 %v749, %v758
        %v761 = vmul.f32 %v759, 1.442695
        %v762 = vpow.pop %v761
        %v763 = vmul.f32 %v760, 1.442695
        %v764 = vpow.pop %v763
        %v765 = vsel %vm752, %v762, 0.0
        %766 = vadd.xlane.f32.xlu0 %v765
        %v767 = vpop.xlane.xlu0 %766
        %v768 = vsel %vm752, %v764, 0.0
        %769 = vadd.xlane.f32.xlu0 %v768
        %v770 = vpop.xlane.xlu0 %769
        %v771 = vrcp.pop %v767
        %v772 = vmul.f32 %v762, %v771
        %v773 = vrcp.pop %v770
        %v774 = vmul.f32 %v764, %v773
        %775 = vst.msk [vmem:[%s356] sm:$0xff] %vm752, %v772
        %776 = vst.msk [vmem:[%s356 + $0x8] sm:$0xff] %vm752, %v774
        %s777 = sand.u32 %s188, 1
        %s778 = sand.u32 %s188, 1
        %s779 = smul.addr %s778, 16
        %s780 = scalar_lea.vmem [#allocation5], %s779
        %s781 = sand.u32 %s214, 1
        %s782 = scalar_lea.sflag [#allocation4], %s781
        %s783 = sand.u32 %s214, 1
        %s784 = smul.addr %s783, 16
        %s785 = scalar_lea.vmem [#allocation6], %s784
        %s786 = sand.u32 %s240, 1
        %s787 = scalar_lea.sflag [#allocation8], %s786
        %s788 = sand.u32 %s240, 1
        %s789 = smul.addr %s788, 8
        %s790 = scalar_lea.vmem [#allocation7], %s789
        // Predicated region
        $region53: #{dann1_forward.2} parent=47 // pred_check
          %p791 = pneg %p198
        $region54: #{dann1_forward.2} parent=47 // pred_check_branch
          %793 = sbr.rel (%p791) target = $region56
        $region55: #{dann1_forward.2} parent=47 // pred_region
          %s794 = smul.u32 2, %s28
          %s795 = ssub.s32 3, %s794
          %p796 = scmp.lt.s32.totalorder %s795, 2
          %s797 = scalar_select %p796, %s795, 2
          %s798 = smul.u32 128, %s797
          %p799 = scmp.ne.s32.totalorder 0, %s798
          %s800 = smul.addr %s794, 8
          %s801 = scalar_lea.vmem %s7, %s800
          // Predicated region
          $region57: #{dann1_forward.2} parent=55 // pred_check
            %p802 = pneg %p799
          $region58: #{dann1_forward.2} parent=55 // pred_check_branch
            %804 = sbr.rel (%p802) target = $region60
          $region59: #{dann1_forward.2} parent=55 // pred_region
            // Predicated region
            $region61: #{dann1_forward.2} parent=59 // pred_check
              _
            $region62: #{dann1_forward.2} parent=59 // pred_check_branch
              %806 = sbr.rel (0) target = $region64
            $region63: #{dann1_forward.2} parent=59 // pred_region
              // Predicated region
              $region83: #{dann1_forward.2} parent=63 // pred_check
                _
              $region84: #{dann1_forward.2} parent=63 // pred_check_branch
                %857 = sbr.rel (0) target = $region86
              $region85: #{dann1_forward.2} parent=63 // pred_region
                %s858 = sshrl.u32 %s797, 1
                // While loop
                $region87: #{dann1_forward.2} parent=85 // loop_pre_header
                  _
                $region88: #{dann1_forward.2} parent=85 // loop_header
                  %s860 = sphi 0, %s862
                  %p861 = scmp.ge.s32.totalorder %s860, %s858
                  %s865 = sphi 0, %s874
                  %s866 = sphi %s780, %s877
                  %s867 = sphi %s801, %s878
                $region89: #{dann1_forward.2} parent=85 // loop_header_branch
                  %864 = sbr.rel (%p861) target = $region93
                $region90: #{dann1_forward.2} parent=85 // loop_body
                  %v868 = vld [vmem:[%s866] sm:$0xff]
                  %869 = vst [vmem:[%s867] sm:$0xff] %v868
                  %v870 = vld [vmem:[%s866 + $0x8] sm:$0xff]
                  %871 = vst [vmem:[%s867 + $0x8] sm:$0xff] %v870
                  %s872 = sadd.s32 1, %s865
                  %p873 = scmp.ge.s32.totalorder %s872, %s858
                  %s874 = scalar_select %p873, 0, %s872
                  %s875 = smul.u32 %s874, 16
                  %s876 = smul.u32 %s874, 16
                  %s877 = scalar_lea.vmem %s780, %s875 [#allocation5]
                  %s878 = scalar_lea.vmem %s801, %s876
                $region91: #{dann1_forward.2} parent=85 // loop_footer
                  %s862 = sadd.s32 %s860, 1
                $region92: #{dann1_forward.2} parent=85 // loop_footer_branch
                  %859 = sbr.rel target = $region88
                $region93: #{dann1_forward.2} parent=85 // loop_exit
                  _
                %s879 = sshrl.u32 %s797, 1
                %s880 = sand.u32 %s797, 1
                %s881 = smul.u32 %s879, 2
                %s882 = smul.u32 8, %s881
                %s883 = scalar_lea.vmem %s780, %s882 [#allocation5]
                %s884 = smul.u32 8, %s881
                %s885 = scalar_lea.vmem %s801, %s884
                // While loop
                $region94: #{dann1_forward.2} parent=85 // loop_pre_header
                  _
                $region95: #{dann1_forward.2} parent=85 // loop_header
                  %s887 = sphi 0, %s889
                  %p888 = scmp.ge.s32.totalorder %s887, %s880
                  %s892 = sphi 0, %s899
                  %s893 = sphi %s883, %s902
                  %s894 = sphi %s885, %s903
                $region96: #{dann1_forward.2} parent=85 // loop_header_branch
                  %891 = sbr.rel (%p888) target = $region100
                $region97: #{dann1_forward.2} parent=85 // loop_body
                  %v895 = vld [vmem:[%s893] sm:$0xff]
                  %896 = vst [vmem:[%s894] sm:$0xff] %v895
                  %s897 = sadd.s32 1, %s892
                  %p898 = scmp.ge.s32.totalorder %s897, %s880
                  %s899 = scalar_select %p898, 0, %s897
                  %s900 = smul.u32 %s899, 8
                  %s901 = smul.u32 %s899, 8
                  %s902 = scalar_lea.vmem %s883, %s900 [#allocation5]
                  %s903 = scalar_lea.vmem %s885, %s901
                $region98: #{dann1_forward.2} parent=85 // loop_footer
                  %s889 = sadd.s32 %s887, 1
                $region99: #{dann1_forward.2} parent=85 // loop_footer_branch
                  %886 = sbr.rel target = $region95
                $region100: #{dann1_forward.2} parent=85 // loop_exit
                  _
              $region86: #{dann1_forward.2} parent=63 // pred_fallthru
                _
              // Predicated region
              $region101: #{dann1_forward.2} parent=63 // pred_check
                _
              $region102: #{dann1_forward.2} parent=63 // pred_check_branch
                %905 = sbr.rel target = $region104
              $region103: #{dann1_forward.2} parent=63 // pred_region
                _
              $region104: #{dann1_forward.2} parent=63 // pred_fallthru
                _
            $region64: #{dann1_forward.2} parent=59 // pred_fallthru
              _
            // Predicated region
            $region65: #{dann1_forward.2} parent=59 // pred_check
              _
            $region66: #{dann1_forward.2} parent=59 // pred_check_branch
              %808 = sbr.rel target = $region68
            $region67: #{dann1_forward.2} parent=59 // pred_region
              %s810 = sshrl.u32 %s797, 1
              // While loop
              $region69: #{dann1_forward.2} parent=67 // loop_pre_header
                _
              $region70: #{dann1_forward.2} parent=67 // loop_header
                %s812 = sphi 0, %s814
                %p813 = scmp.ge.s32.totalorder %s812, %s810
                %s817 = sphi 0, %s826
                %s818 = sphi %s780, %s829
                %s819 = sphi %s801, %s830
              $region71: #{dann1_forward.2} parent=67 // loop_header_branch
                %816 = sbr.rel (%p813) target = $region75
              $region72: #{dann1_forward.2} parent=67 // loop_body
                %v820 = vld [vmem:[%s818] sm:$0xff]
                %821 = vst [vmem:[%s819] sm:$0xff] %v820
                %v822 = vld [vmem:[%s818 + $0x8] sm:$0xff]
                %823 = vst [vmem:[%s819 + $0x8] sm:$0xff] %v822
                %s824 = sadd.s32 1, %s817
                %p825 = scmp.ge.s32.totalorder %s824, %s810
                %s826 = scalar_select %p825, 0, %s824
                %s827 = smul.u32 %s826, 16
                %s828 = smul.u32 %s826, 16
                %s829 = scalar_lea.vmem %s780, %s827 [#allocation5]
                %s830 = scalar_lea.vmem %s801, %s828
              $region73: #{dann1_forward.2} parent=67 // loop_footer
                %s814 = sadd.s32 %s812, 1
              $region74: #{dann1_forward.2} parent=67 // loop_footer_branch
                %811 = sbr.rel target = $region70
              $region75: #{dann1_forward.2} parent=67 // loop_exit
                _
              %s831 = sshrl.u32 %s797, 1
              %s832 = sand.u32 %s797, 1
              %s833 = smul.u32 %s831, 2
              %s834 = smul.u32 8, %s833
              %s835 = scalar_lea.vmem %s780, %s834 [#allocation5]
              %s836 = smul.u32 8, %s833
              %s837 = scalar_lea.vmem %s801, %s836
              // While loop
              $region76: #{dann1_forward.2} parent=67 // loop_pre_header
                _
              $region77: #{dann1_forward.2} parent=67 // loop_header
                %s839 = sphi 0, %s841
                %p840 = scmp.ge.s32.totalorder %s839, %s832
                %s844 = sphi 0, %s851
                %s845 = sphi %s835, %s854
                %s846 = sphi %s837, %s855
              $region78: #{dann1_forward.2} parent=67 // loop_header_branch
                %843 = sbr.rel (%p840) target = $region82
              $region79: #{dann1_forward.2} parent=67 // loop_body
                %v847 = vld [vmem:[%s845] sm:$0xff]
                %848 = vst [vmem:[%s846] sm:$0xff] %v847
                %s849 = sadd.s32 1, %s844
                %p850 = scmp.ge.s32.totalorder %s849, %s832
                %s851 = scalar_select %p850, 0, %s849
                %s852 = smul.u32 %s851, 8
                %s853 = smul.u32 %s851, 8
                %s854 = scalar_lea.vmem %s835, %s852 [#allocation5]
                %s855 = scalar_lea.vmem %s837, %s853
              $region80: #{dann1_forward.2} parent=67 // loop_footer
                %s841 = sadd.s32 %s839, 1
              $region81: #{dann1_forward.2} parent=67 // loop_footer_branch
                %838 = sbr.rel target = $region77
              $region82: #{dann1_forward.2} parent=67 // loop_exit
                _
            $region68: #{dann1_forward.2} parent=59 // pred_fallthru
              _
          $region60: #{dann1_forward.2} parent=55 // pred_fallthru
            _
          %906 = vnop
        $region56: #{dann1_forward.2} parent=47 // pred_fallthru
          _
        // Predicated region
        $region105: #{dann1_forward.2} parent=47 // pred_check
          %p907 = pneg %p224
        $region106: #{dann1_forward.2} parent=47 // pred_check_branch
          %909 = sbr.rel (%p907) target = $region108
        $region107: #{dann1_forward.2} parent=47 // pred_region
          %s910 = smul.u32 2, %s28
          %s911 = ssub.s32 3, %s910
          %p912 = scmp.lt.s32.totalorder %s911, 2
          %s913 = scalar_select %p912, %s911, 2
          %s914 = smul.u32 64, %s913
          %s915 = smul.u32 %s914, 2
          %s917 = ssub.s32 256, %s915
          %918 = vsyncadd %s782, %s917
          %p919 = scmp.ne.s32.totalorder 0, %s915
          %s920 = smul.addr %s910, 2
          %s921 = smul.addr %s920, 64
          %s922 = scalar_lea.hbm %s8, %s921
          %s923 = smul.u32 8, %s913
          %s924 = sshll.u32 %s785, 4
          %s925 = int_to_ptr.vmem [resolvable:$true] %s924
          %s926 = sshll.u32 %s923, 4
          %930 = dma.vmem_to_hbm [thread:$0]  (%p919), %s925, %s926, %s922, %s782, 128, 128, 8
        $region108: #{dann1_forward.2} parent=47 // pred_fallthru
          _
        // Predicated region
        $region109: #{dann1_forward.2} parent=47 // pred_check
          %p931 = pneg %p250
        $region110: #{dann1_forward.2} parent=47 // pred_check_branch
          %933 = sbr.rel (%p931) target = $region112
        $region111: #{dann1_forward.2} parent=47 // pred_region
          %s934 = smul.u32 2, %s28
          %s935 = ssub.s32 3, %s934
          %p936 = scmp.lt.s32.totalorder %s935, 2
          %s937 = scalar_select %p936, %s935, 2
          %s938 = smul.u32 64, %s937
          %s940 = ssub.s32 128, %s938
          %941 = vsyncadd %s787, %s940
          %p942 = scmp.ne.s32.totalorder 0, %s938
          %s943 = smul.addr %s934, 64
          %s944 = scalar_lea.hbm %s9, %s943
          %s945 = smul.u32 4, %s937
          %s946 = sshll.u32 %s790, 4
          %s947 = int_to_ptr.vmem [resolvable:$true] %s946
          %s948 = sshll.u32 %s945, 4
          %952 = dma.vmem_to_hbm [thread:$0]  (%p942), %s947, %s948, %s944, %s787, 64, 64, 4
        $region112: #{dann1_forward.2} parent=47 // pred_fallthru
          _
      $region48: #{dann1_forward.2} parent=5 // pred_fallthru
        _
      %p953 = scmp.le.s32.totalorder 2, %s23
      // Predicated region
      $region113: #{dann1_forward.2} parent=5 // pred_check
        %p954 = pneg %p953
      $region114: #{dann1_forward.2} parent=5 // pred_check_branch
        %956 = sbr.rel (%p954) target = $region116
      $region115: #{dann1_forward.2} parent=5 // pred_region
        %s957 = ssub.s32 %s23, 2
        // Predicated region
        $region117: #{dann1_forward.2} parent=115 // pred_check
          %p958 = pneg %p204
        $region118: #{dann1_forward.2} parent=115 // pred_check_branch
          %960 = sbr.rel (%p958) target = $region120
        $region119: #{dann1_forward.2} parent=115 // pred_region
          %s961 = sand.u32 %s189, 1
          %s962 = sand.u32 %s189, 1
          %s963 = smul.addr %s962, 16
          %s964 = scalar_lea.vmem [#allocation5], %s963
        $region120: #{dann1_forward.2} parent=115 // pred_fallthru
          _
        // Predicated region
        $region121: #{dann1_forward.2} parent=115 // pred_check
          %p965 = pneg %p230
        $region122: #{dann1_forward.2} parent=115 // pred_check_branch
          %967 = sbr.rel (%p965) target = $region124
        $region123: #{dann1_forward.2} parent=115 // pred_region
          %s968 = sand.u32 %s215, 1
          %s969 = scalar_lea.sflag [#allocation4], %s968
          %s970 = sand.u32 %s215, 1
          %s971 = smul.addr %s970, 16
          %s972 = scalar_lea.vmem [#allocation6], %s971
          %973 = dma.done %s969, 256
        $region124: #{dann1_forward.2} parent=115 // pred_fallthru
          _
        // Predicated region
        $region125: #{dann1_forward.2} parent=115 // pred_check
          %p974 = pneg %p256
        $region126: #{dann1_forward.2} parent=115 // pred_check_branch
          %976 = sbr.rel (%p974) target = $region128
        $region127: #{dann1_forward.2} parent=115 // pred_region
          %s977 = sand.u32 %s241, 1
          %s978 = scalar_lea.sflag [#allocation8], %s977
          %s979 = sand.u32 %s241, 1
          %s980 = smul.addr %s979, 8
          %s981 = scalar_lea.vmem [#allocation7], %s980
          %982 = dma.done %s978, 128
        $region128: #{dann1_forward.2} parent=115 // pred_fallthru
          _
      $region116: #{dann1_forward.2} parent=5 // pred_fallthru
        _
    $region6: #{dann1_forward.2} parent=1 // loop_footer
      %s27 = sadd.s32 1, %s23
    $region7: #{dann1_forward.2} parent=1 // loop_footer_branch
      %22 = sbr.rel target = $region3
    $region8: #{dann1_forward.2} parent=1 // loop_exit
      _
    %983 = vsyncpa [#allocation3], 1
    %s984 = scalar_lea.sflag [#allocation3], 1
    %985 = vsyncpa %s984, 1
    %986 = vsyncpa [#allocation4], 1
    %s987 = scalar_lea.sflag [#allocation4], 1
    %988 = vsyncpa %s987, 1
    %989 = vsyncpa [#allocation8], 1
    %s990 = scalar_lea.sflag [#allocation8], 1
    %991 = vsyncpa %s990, 1

// kernel: dann1_forward.3
$region0: #{dann1_forward.3}
  #allocation0 [shape = 'u32[]', space=smem, size = 0x4, offset = 0x4, fixed_abs, tag = 'smem constant byte address 0x4 - core index']
  #allocation1 [shape = 'u32[144,128]{1,0:T(1,128)}', space=vmem, size = 0x12000, scoped, tag = 'internal scratch']
  %s0 = inlined_call_operand.vmem [shape: f32[8,11], index: 0, kind: input, shape index: {}]
  %s1 = inlined_call_operand.vmem [shape: f32[11,256], index: 1, kind: input, shape index: {}]
  %s2 = inlined_call_operand.vmem [shape: f32[1,256], index: 2, kind: input, shape index: {}]
  %s3 = inlined_call_operand.vmem [shape: f32[256,128], index: 3, kind: input, shape index: {}]
  %s4 = inlined_call_operand.vmem [shape: f32[1,128], index: 4, kind: input, shape index: {}]
  %s5 = inlined_call_operand.hbm [shape: bf16[8,256], index: 5, kind: output, shape index: {0}]
  %s6 = inlined_call_operand.hbm [shape: bf16[8,128], index: 6, kind: output, shape index: {1}]
  %7 = xla_tuple %s5, %s6
  %s8 = sld [smem:[#allocation0]]
  $region38: #{dann1_forward.3} parent=0
    _
  %s10 = ssub.s32 1, %s8
  %s11 = scalar_select 0, %s10, %s8
  $region1: #{dann1_forward.3} parent=0
    #allocation2 [shape = 'u8[8192]{0}', space=vmem, size = 0x2000, scoped, tag = 'output window, operand 0, single buffered']
    #allocation3 [shape = 's32[1]{0}', space=sflag, size = 0x4, scoped, tag = 'scoped memory for dann1_forward.3']
    #allocation4 [shape = 'u8[4096]{0}', space=vmem, size = 0x1000, scoped, tag = 'output window, operand 1, single buffered']
    #allocation5 [shape = 's32[1]{0}', space=sflag, size = 0x4, scoped, tag = 'scoped memory for dann1_forward.3']
    %12 = vsyncpa [#allocation3], 0
    %13 = vsyncpa [#allocation5], 0
    // Predicated region
    $region2: #{dann1_forward.3} parent=1 // pred_check
      _
    $region3: #{dann1_forward.3} parent=1 // pred_check_branch
      %15 = sbr.rel (0) target = $region5
    $region4: #{dann1_forward.3} parent=1 // pred_region
      _
    $region5: #{dann1_forward.3} parent=1 // pred_fallthru
      _
    // Predicated region
    $region6: #{dann1_forward.3} parent=1 // pred_check
      _
    $region7: #{dann1_forward.3} parent=1 // pred_check_branch
      %17 = sbr.rel (0) target = $region9
    $region8: #{dann1_forward.3} parent=1 // pred_region
      _
    $region9: #{dann1_forward.3} parent=1 // pred_fallthru
      _
    // Predicated region
    $region10: #{dann1_forward.3} parent=1 // pred_check
      _
    $region11: #{dann1_forward.3} parent=1 // pred_check_branch
      %19 = sbr.rel (0) target = $region13
    $region12: #{dann1_forward.3} parent=1 // pred_region
      _
    $region13: #{dann1_forward.3} parent=1 // pred_fallthru
      _
    // Predicated region
    $region14: #{dann1_forward.3} parent=1 // pred_check
      _
    $region15: #{dann1_forward.3} parent=1 // pred_check_branch
      %21 = sbr.rel (0) target = $region17
    $region16: #{dann1_forward.3} parent=1 // pred_region
      _
    $region17: #{dann1_forward.3} parent=1 // pred_fallthru
      _
    // Predicated region
    $region18: #{dann1_forward.3} parent=1 // pred_check
      _
    $region19: #{dann1_forward.3} parent=1 // pred_check_branch
      %23 = sbr.rel (0) target = $region21
    $region20: #{dann1_forward.3} parent=1 // pred_region
      _
    $region21: #{dann1_forward.3} parent=1 // pred_fallthru
      _
    %v24 = vld [vmem:[%s0] sm:$0xff]
    %v25 = vld [vmem:[%s0 + $0x8] sm:$0xff]
    %v26 = vld [vmem:[%s1] sm:$0xff]
    %v27 = vld [vmem:[%s1 + $0x8] sm:$0xff]
    %v28 = vld [vmem:[%s1 + $0x10] sm:$0x7]
    %v29 = vld [vmem:[%s1 + $0x18] sm:$0x7]
    %v30 = vld [vmem:[%s2] sm:$0x3]
    %v31 = vld [vmem:[%s3] sm:$0xff]
    %v32 = vld [vmem:[%s3 + $0x8] sm:$0xff]
    %v33 = vld [vmem:[%s3 + $0x10] sm:$0xff]
    %v34 = vld [vmem:[%s3 + $0x18] sm:$0xff]
    %v35 = vld [vmem:[%s3 + $0x20] sm:$0xff]
    %v36 = vld [vmem:[%s3 + $0x28] sm:$0xff]
    %v37 = vld [vmem:[%s3 + $0x30] sm:$0xff]
    %v38 = vld [vmem:[%s3 + $0x38] sm:$0xff]
    %v39 = vld [vmem:[%s3 + $0x40] sm:$0xff]
    %v40 = vld [vmem:[%s3 + $0x48] sm:$0xff]
    %v41 = vld [vmem:[%s3 + $0x50] sm:$0xff]
    %v42 = vld [vmem:[%s3 + $0x58] sm:$0xff]
    %v43 = vld [vmem:[%s3 + $0x60] sm:$0xff]
    %v44 = vld [vmem:[%s3 + $0x68] sm:$0xff]
    %v45 = vld [vmem:[%s3 + $0x70] sm:$0xff]
    %v46 = vld [vmem:[%s3 + $0x78] sm:$0xff]
    %v47 = vld [vmem:[%s3 + $0x80] sm:$0xff]
    %v48 = vld [vmem:[%s3 + $0x88] sm:$0xff]
    %v49 = vld [vmem:[%s3 + $0x90] sm:$0xff]
    %v50 = vld [vmem:[%s3 + $0x98] sm:$0xff]
    %v51 = vld [vmem:[%s3 + $0xa0] sm:$0xff]
    %v52 = vld [vmem:[%s3 + $0xa8] sm:$0xff]
    %v53 = vld [vmem:[%s3 + $0xb0] sm:$0xff]
    %v54 = vld [vmem:[%s3 + $0xb8] sm:$0xff]
    %v55 = vld [vmem:[%s3 + $0xc0] sm:$0xff]
    %v56 = vld [vmem:[%s3 + $0xc8] sm:$0xff]
    %v57 = vld [vmem:[%s3 + $0xd0] sm:$0xff]
    %v58 = vld [vmem:[%s3 + $0xd8] sm:$0xff]
    %v59 = vld [vmem:[%s3 + $0xe0] sm:$0xff]
    %v60 = vld [vmem:[%s3 + $0xe8] sm:$0xff]
    %v61 = vld [vmem:[%s3 + $0xf0] sm:$0xff]
    %v62 = vld [vmem:[%s3 + $0xf8] sm:$0xff]
    %v63 = vld [vmem:[%s4] sm:$0x1]
    %v65 = vlaneseq
    %v66 = vshrl.u32 %v65, 7
    %v67 = vsub.s32 0, %v66
    %v68 = vrot.slane %v30, %v67
    %v69 = vlaneseq
    %v70 = vshrl.u32 %v69, 7
    %v71 = vsub.s32 1, %v70
    %v72 = vrot.slane %v30, %v71
    %vm75 = vcmask 89088
    %v77 = vsel %vm75, %v24, 0
    %v80 = vsel %vm75, %v25, 0
    %vm82 = vcmask 1042432
    %v84 = vsel %vm82, %v28, 0
    %v87 = vsel %vm82, %v29, 0
    %89 = vmatprep.subr.mxu0 %v27
    %90 = vmatpush1.msra.mxu0 %v26
    %91 = vmatprep.subr.mxu0 %v87
    %92 = vmatpush1.msra.mxu0 %v84
    %93 = vmatprep.subr.mxu0 0.0
    %94 = vmatpush1.msra.mxu0 0.0
    %95 = vmatprep.subr.mxu0 0.0
    %96 = vmatpush1.msra.mxu0 0.0
    %97 = vmatprep.subr.mxu0 0.0
    %98 = vmatpush1.msra.mxu0 0.0
    %99 = vmatprep.subr.mxu0 0.0
    %100 = vmatpush1.msra.mxu0 0.0
    %101 = vmatprep.subr.mxu0 0.0
    %102 = vmatpush1.msra.mxu0 0.0
    %103 = vmatprep.subr.mxu0 0.0
    %104 = vmatpush1.msra.mxu0 0.0
    %105 = vmatprep.subr.mxu0 0.0
    %106 = vmatpush1.msra.mxu0 0.0
    %107 = vmatprep.subr.mxu0 0.0
    %108 = vmatpush1.msra.mxu0 0.0
    %109 = vmatprep.subr.mxu0 0.0
    %110 = vmatpush1.msra.mxu0 0.0
    %111 = vmatprep.subr.mxu0 0.0
    %112 = vmatpush1.msra.mxu0 0.0
    %113 = vmatprep.subr.mxu0 0.0
    %114 = vmatpush1.msra.mxu0 0.0
    %115 = vmatprep.subr.mxu0 0.0
    %116 = vmatpush1.msra.mxu0 0.0
    %117 = vmatprep.subr.mxu0 0.0
    %118 = vmatpush1.msra.mxu0 0.0
    %119 = vmatprep.subr.mxu0 0.0
    %120 = vmatpush1.msra.mxu0 0.0
    %121 = vmatprep.subr.mxu0 0.0
    %122 = vmatpush1.msra.mxu0 0.0
    %123 = vmatprep.subr.mxu0 0.0
    %124 = vmatpush1.msra.mxu0 0.0
    %125 = vmatprep.subr.mxu0 0.0
    %126 = vmatpush1.msra.mxu0 0.0
    %127 = vmatprep.subr.mxu0 0.0
    %128 = vmatpush1.msra.mxu0 0.0
    %129 = vmatprep.subr.mxu0 0.0
    %130 = vmatpush1.msra.mxu0 0.0
    %131 = vmatprep.subr.mxu0 0.0
    %132 = vmatpush1.msra.mxu0 0.0
    %133 = vmatprep.subr.mxu0 0.0
    %134 = vmatpush1.msra.mxu0 0.0
    %135 = vmatprep.subr.mxu0 0.0
    %136 = vmatpush1.msra.mxu0 0.0
    %137 = vmatprep.subr.mxu0 0.0
    %138 = vmatpush1.msra.mxu0 0.0
    %139 = vmatprep.subr.mxu0 0.0
    %140 = vmatpush1.msra.mxu0 0.0
    %141 = vmatprep.subr.mxu0 0.0
    %142 = vmatpush1.msra.mxu0 0.0
    %143 = vmatprep.subr.mxu0 0.0
    %144 = vmatpush1.msra.mxu0 0.0
    %145 = vmatprep.subr.mxu0 0.0
    %146 = vmatpush1.msra.mxu0 0.0
    %147 = vmatprep.subr.mxu0 0.0
    %148 = vmatpush1.msra.mxu0 0.0
    %149 = vmatprep.subr.mxu0 0.0
    %150 = vmatpush1.msra.mxu0 0.0
    %151 = vmatprep.subr.mxu0 0.0
    %152 = vmatpush1.msra.mxu0 0.0
    %153 = vmatprep.mubr.f32.mxu0 0.0
    %154 = vmatmul.mubr.f32.gmra.mrb[0].mxu0 %v77
    %v155 = vpop.f32.mrb[0].mxu0
    %v156 = vadd.f32 %v68, %v155
    %v157 = vpop.f32.mrb[0].mxu0
    %v158 = vadd.f32 %v72, %v157
    %159 = vmatprep.mubr.f32.mxu0 0.0
    %160 = vmatmul.mubr.f32.gmra.mrb[0].mxu0 %v80
    %v161 = vpop.f32.mrb[0].mxu0
    %v162 = vadd.f32 %v68, %v161
    %v163 = vpop.f32.mrb[0].mxu0
    %v164 = vadd.f32 %v72, %v163
    %165 = vdwg.mxu0
    %v166 = vmax.f32 %v156, 0.0
    %v167 = vmax.f32 %v158, 0.0
    %v168 = vmax.f32 %v162, 0.0
    %v169 = vmax.f32 %v164, 0.0
    %v171 = vlaneseq
    %v172 = vshrl.u32 %v171, 7
    %v173 = vsub.s32 0, %v172
    %v174 = vrot.slane %v63, %v173
    %176 = vmatprep.subr.mxu0 0.0
    %177 = vmatpush1.msra.mxu0 %v31
    %178 = vmatprep.subr.mxu0 0.0
    %179 = vmatpush1.msra.mxu0 %v32
    %180 = vmatprep.subr.mxu0 0.0
    %181 = vmatpush1.msra.mxu0 %v33
    %182 = vmatprep.subr.mxu0 0.0
    %183 = vmatpush1.msra.mxu0 %v34
    %184 = vmatprep.subr.mxu0 0.0
    %185 = vmatpush1.msra.mxu0 %v35
    %186 = vmatprep.subr.mxu0 0.0
    %187 = vmatpush1.msra.mxu0 %v36
    %188 = vmatprep.subr.mxu0 0.0
    %189 = vmatpush1.msra.mxu0 %v37
    %190 = vmatprep.subr.mxu0 0.0
    %191 = vmatpush1.msra.mxu0 %v38
    %192 = vmatprep.subr.mxu0 0.0
    %193 = vmatpush1.msra.mxu0 %v39
    %194 = vmatprep.subr.mxu0 0.0
    %195 = vmatpush1.msra.mxu0 %v40
    %196 = vmatprep.subr.mxu0 0.0
    %197 = vmatpush1.msra.mxu0 %v41
    %198 = vmatprep.subr.mxu0 0.0
    %199 = vmatpush1.msra.mxu0 %v42
    %200 = vmatprep.subr.mxu0 0.0
    %201 = vmatpush1.msra.mxu0 %v43
    %202 = vmatprep.subr.mxu0 0.0
    %203 = vmatpush1.msra.mxu0 %v44
    %204 = vmatprep.subr.mxu0 0.0
    %205 = vmatpush1.msra.mxu0 %v45
    %206 = vmatprep.subr.mxu0 0.0
    %207 = vmatpush1.msra.mxu0 %v46
    %208 = vmatprep.subr.mxu0 0.0
    %209 = vmatpush1.msra.mxu0 %v47
    %210 = vmatprep.subr.mxu0 0.0
    %211 = vmatpush1.msra.mxu0 %v48
    %212 = vmatprep.subr.mxu0 0.0
    %213 = vmatpush1.msra.mxu0 %v49
    %214 = vmatprep.subr.mxu0 0.0
    %215 = vmatpush1.msra.mxu0 %v50
    %216 = vmatprep.subr.mxu0 0.0
    %217 = vmatpush1.msra.mxu0 %v51
    %218 = vmatprep.subr.mxu0 0.0
    %219 = vmatpush1.msra.mxu0 %v52
    %220 = vmatprep.subr.mxu0 0.0
    %221 = vmatpush1.msra.mxu0 %v53
    %222 = vmatprep.subr.mxu0 0.0
    %223 = vmatpush1.msra.mxu0 %v54
    %224 = vmatprep.subr.mxu0 0.0
    %225 = vmatpush1.msra.mxu0 %v55
    %226 = vmatprep.subr.mxu0 0.0
    %227 = vmatpush1.msra.mxu0 %v56
    %228 = vmatprep.subr.mxu0 0.0
    %229 = vmatpush1.msra.mxu0 %v57
    %230 = vmatprep.subr.mxu0 0.0
    %231 = vmatpush1.msra.mxu0 %v58
    %232 = vmatprep.subr.mxu0 0.0
    %233 = vmatpush1.msra.mxu0 %v59
    %234 = vmatprep.subr.mxu0 0.0
    %235 = vmatpush1.msra.mxu0 %v60
    %236 = vmatprep.subr.mxu0 0.0
    %237 = vmatpush1.msra.mxu0 %v61
    %238 = vmatprep.subr.mxu0 0.0
    %239 = vmatpush1.msra.mxu0 %v62
    %240 = vmatprep.mubr.f32.mxu0 %v167
    %241 = vmatmul.mubr.f32.gmra.mrb[0].mxu0 %v166
    %v242 = vpop.f32.mrb[0].mxu0
    %v243 = vadd.f32 %v174, %v242
    %v244 = vpop.f32.mrb[0].mxu0
    %245 = vmatprep.mubr.f32.mxu0 %v169
    %246 = vmatmul.mubr.f32.gmra.mrb[0].mxu0 %v168
    %v247 = vpop.f32.mrb[0].mxu0
    %v248 = vadd.f32 %v174, %v247
    %v249 = vpop.f32.mrb[0].mxu0
    %250 = vdwg.mxu0
    %v251 = vmax.f32 %v243, 0.0
    %v252 = vmax.f32 %v248, 0.0
    %v253 = vpack.c.bf16 %v168, %v166
    %v254 = vpack.c.bf16 %v169, %v167
    %v257 = vunpack.c.l.b16 %v253
    %v258 = vunpack.c.l.b16 %v254
    %v259 = vunpack.c.h.b16 %v253
    %v260 = vunpack.c.h.b16 %v254
    %v261 = vpack.c.b16 %v258, %v257
    %v262 = vpack.c.b16 %v260, %v259
    %265 = vst [vmem:[#allocation2] sm:$0xff] %v261
    %266 = vst [vmem:[#allocation2 + $0x8] sm:$0xff] %v262
    %v267 = vpack.c.bf16 %v252, %v251
    %v269 = vunpack.c.l.b16 %v267
    %v270 = vunpack.c.h.b16 %v267
    %v271 = vpack.c.b16 %v269, %v269
    %v272 = vpack.c.b16 %v270, %v270
    %275 = vst [vmem:[#allocation4] sm:$0xf] %v271
    %276 = vst [vmem:[#allocation4 + $0x4] sm:$0xf] %v272
    // Predicated region
    $region22: #{dann1_forward.3} parent=1 // pred_check
      _
    $region23: #{dann1_forward.3} parent=1 // pred_check_branch
      %278 = sbr.rel (0) target = $region25
    $region24: #{dann1_forward.3} parent=1 // pred_region
      %s280 = ssub.s32 256, 128
      %281 = vsyncadd [#allocation3], %s280
      %s282 = sshll.u32 [#allocation2], 4
      %s283 = int_to_ptr.vmem [resolvable:$true] %s282
      %288 = dma.vmem_to_hbm [thread:$0]  %s283, 128, %s5, [#allocation3], 128, 128, 8
    $region25: #{dann1_forward.3} parent=1 // pred_fallthru
      _
    // Predicated region
    $region26: #{dann1_forward.3} parent=1 // pred_check
      _
    $region27: #{dann1_forward.3} parent=1 // pred_check_branch
      %290 = sbr.rel (0) target = $region29
    $region28: #{dann1_forward.3} parent=1 // pred_region
      %s292 = ssub.s32 128, 64
      %293 = vsyncadd [#allocation5], %s292
      %s294 = sshll.u32 [#allocation4], 4
      %s295 = int_to_ptr.vmem [resolvable:$true] %s294
      %300 = dma.vmem_to_hbm [thread:$0]  %s295, 64, %s6, [#allocation5], 64, 64, 4
    $region29: #{dann1_forward.3} parent=1 // pred_fallthru
      _
    // Predicated region
    $region30: #{dann1_forward.3} parent=1 // pred_check
      _
    $region31: #{dann1_forward.3} parent=1 // pred_check_branch
      %302 = sbr.rel (0) target = $region33
    $region32: #{dann1_forward.3} parent=1 // pred_region
      %303 = dma.done [#allocation3], 256
    $region33: #{dann1_forward.3} parent=1 // pred_fallthru
      _
    // Predicated region
    $region34: #{dann1_forward.3} parent=1 // pred_check
      _
    $region35: #{dann1_forward.3} parent=1 // pred_check_branch
      %305 = sbr.rel (0) target = $region37
    $region36: #{dann1_forward.3} parent=1 // pred_region
      %306 = dma.done [#allocation5], 128
    $region37: #{dann1_forward.3} parent=1 // pred_fallthru
      _
    %307 = vsyncpa [#allocation3], 1
    %308 = vsyncpa [#allocation5], 1

</llo_original>
